<compile_context>
chip_gen: v5e
topology: v5e:2x2
jax: 0.10.0
libtpu: 0.0.40
codegen_flags: <defaults>
</compile_context>

<pallas_src>
import functools

import jax
import jax.numpy as jnp
from jax import lax
from jax.experimental import pallas as pl
from jax.experimental.pallas import tpu as pltpu

# Small synthetic stand-in for FEAT_DIMS['hrnet48'] (real: (48, 96, 192, 384)).
FEAT_DIMS = (8, 16, 32, 64)
INPUT_EMBED_DIM = 32


def _round_up(x, m):
    return (x + m - 1) // m * m


def _vmem_capacity_bytes():
    """Trace-time VMEM query with a conservative (v7x-safe) fallback."""
    try:
        info = pltpu.get_tpu_info()
        for attr in ("vmem_capacity_bytes", "vmem_size_bytes", "vmem_bytes"):
            cap = getattr(info, attr, None)
            if cap:
                return int(cap)
    except Exception:
        pass
    return 64 * 1024 * 1024


# ----------------------------------------------------------------------------
# Pallas kernel: fused "project feature tile -> bilinear-sample -> accumulate"
# for one scale.  Grid = (N, P_tiles, HW_tiles); HW is the reduction axis.
# ----------------------------------------------------------------------------
def _scale_kernel(*refs, hw_tile, first):
    if first:
        tgt_ref, wgt_ref, feat_ref, w_ref, o_ref = refs
        prev_ref = None
    else:
        tgt_ref, wgt_ref, feat_ref, w_ref, prev_ref, o_ref = refs
    # tgt_ref : (1, P_tile, 4)       i32  flat corner indices (-1 == invalid)
    # wgt_ref : (1, P_tile, 4)       f32  bilinear corner weights
    # feat_ref: (1, C, hw_tile)      bf16 feature tile (natural NCHW layout)
    # w_ref   : (C, d_pad)           bf16 per-scale slice of bottleneck weight
    # prev_ref: (1, P_tile, d_pad)   f32  running cross-scale accumulator
    # o_ref   : (1, P_tile, d_pad)   f32  output block (resident across t)
    t = pl.program_id(2)

    @pl.when(t == 0)
    def _init():
        if first:
            o_ref[...] = jnp.zeros_like(o_ref)
        else:
            o_ref[...] = prev_ref[...]          # continue cross-scale accumulation

    # --- project-first: contract C (LHS dim 0) on the MXU, bf16 operands ----
    fproj = lax.dot_general(
        feat_ref[0], w_ref[...],
        dimension_numbers=(((0,), (0,)), ((), ())),
        preferred_element_type=jnp.float32,
    ).astype(jnp.bfloat16)                       # (hw_tile, d_pad)

    # --- sparse bilinear one-hot via flat-index compare (f32 VPU math) ------
    p_tile = o_ref.shape[1]
    base = t * hw_tile
    flat = lax.broadcasted_iota(jnp.int32, (p_tile, hw_tile), 1) + base
    tg = tgt_ref[0]                              # (P_tile, 4) i32
    wg = wgt_ref[0]                              # (P_tile, 4) f32
    s_mat = jnp.where(flat == tg[:, 0:1], wg[:, 0:1], 0.0)
    for c in range(1, 4):
        s_mat = s_mat + jnp.where(flat == tg[:, c:c + 1], wg[:, c:c + 1], 0.0)

    # --- sample from the projected (lane-dense) tile and accumulate (f32) ---
    o_ref[0] = o_ref[0] + jnp.dot(s_mat.astype(jnp.bfloat16), fproj,
                                  preferred_element_type=jnp.float32)


def sample_project_scale(tgts, wgts, feat_nchw, w_slice, prev, *, d_pad, p_tile,
                         max_hw_tile, vmem_limit):
    """Fused bilinear vert_align + per-scale bottleneck projection + cross-scale
    accumulation.

    tgts/wgts: (N, P_pad, 4) precomputed flat corner targets / weights
    feat_nchw: (N, C, H, W)  feature map for this scale
    w_slice:   (C, D)        per-scale slice of the bottleneck weight (transposed)
    prev:      (N, P_pad, d_pad) running accumulator from previous scales or None
    Returns (N, P_pad, d_pad) f32 with columns [D:] all zero.
    """
    N, C, H, W = feat_nchw.shape
    P_pad = tgts.shape[1]
    D = w_slice.shape[1]
    HW = H * W

    hw_tile = min(max_hw_tile, _round_up(HW, 128))
    HWp = _round_up(HW, hw_tile)
    T = HWp // hw_tile

    # NCHW -> (N, C, HW) is a free reshape; bf16 cast is a single elementwise
    # pass (no NHWC transpose materialization).
    feat_flat = feat_nchw.reshape(N, C, HW).astype(jnp.bfloat16)
    if HWp != HW:
        # Padded positions have flat index >= HW; no corner target can hit them.
        feat_flat = jnp.pad(feat_flat, ((0, 0), (0, 0), (0, HWp - HW)))
    w_pad = jnp.pad(w_slice.astype(jnp.bfloat16), ((0, 0), (0, d_pad - D)))

    first = prev is None
    kernel = functools.partial(_scale_kernel, hw_tile=hw_tile, first=first)

    in_specs = [
        pl.BlockSpec((1, p_tile, 4), lambda n, p, t: (n, p, 0)),     # tgts
        pl.BlockSpec((1, p_tile, 4), lambda n, p, t: (n, p, 0)),     # wgts
        pl.BlockSpec((1, C, hw_tile), lambda n, p, t: (n, 0, t)),    # features
        pl.BlockSpec((C, d_pad), lambda n, p, t: (0, 0)),            # weight slice
    ]
    args = [tgts, wgts, feat_flat, w_pad]
    io_aliases = {}
    if not first:
        in_specs.append(pl.BlockSpec((1, p_tile, d_pad), lambda n, p, t: (n, p, 0)))
        args.append(prev)
        io_aliases = {4: 0}          # accumulate in place across scales

    return pl.pallas_call(
        kernel,
        out_shape=jax.ShapeDtypeStruct((N, P_pad, d_pad), jnp.float32),
        grid_spec=pltpu.PrefetchScalarGridSpec(
            num_scalar_prefetch=0,
            grid=(N, P_pad // p_tile, T),            # HW reduction axis last
            in_specs=in_specs,
            out_specs=pl.BlockSpec((1, p_tile, d_pad), lambda n, p, t: (n, p, 0)),
        ),
        input_output_aliases=io_aliases,
        compiler_params=pltpu.CompilerParams(
            # batch + point-tile axes feed both TensorCores; HW is a reduction.
            dimension_semantics=("parallel", "parallel", "arbitrary"),
            vmem_limit_bytes=vmem_limit,
        ),
    )(*args)


# ----------------------------------------------------------------------------
# Precomputed bilinear corner tables (hoisted out of the per-HW-tile loop).
# ----------------------------------------------------------------------------
def _corner_tables(pts, H, W):
    # pts: (N, P_pad, 2) f32 coords in [-1, 1], (x indexes W, y indexes H).
    gx = pts[..., 0]
    gy = pts[..., 1]
    ix = (gx + 1.0) * (0.5 * (W - 1))     # align_corners=True mapping
    iy = (gy + 1.0) * (0.5 * (H - 1))
    x0f = jnp.floor(ix)
    y0f = jnp.floor(iy)
    wx1 = ix - x0f
    wx0 = 1.0 - wx1
    wy1 = iy - y0f
    wy0 = 1.0 - wy1
    x0 = x0f.astype(jnp.int32)
    x1 = x0 + 1
    y0 = y0f.astype(jnp.int32)
    y1 = y0 + 1

    def tgt(yc, xc):
        # Validity folded into the flat target (-1) BEFORE flattening, so an
        # out-of-range x1 == W can never alias pixel (y+1, 0).
        valid = (xc >= 0) & (xc < W) & (yc >= 0) & (yc < H)
        return jnp.where(valid, yc * W + xc, -1)

    tgts = jnp.stack([tgt(y0, x0), tgt(y0, x1), tgt(y1, x0), tgt(y1, x1)], axis=-1)
    wgts = jnp.stack([wy0 * wx0, wy0 * wx1, wy1 * wx0, wy1 * wx1], axis=-1)
    return tgts.astype(jnp.int32), wgts.astype(jnp.float32)


# ----------------------------------------------------------------------------
# Stand-in backbone (plain JAX glue).
# ----------------------------------------------------------------------------
# TODO(synk): HRNet48 seg backbone (get_seg_model) is not translated; this is a
# deterministic multi-scale stand-in producing NCHW feature maps with the same
# interface (list of (N, C_i, H/2^i, W/2^i) tensors).
def standin_backbone(image, backbone_ws):
    N, Cin, H, W = image.shape
    feats = []
    for i, wb in enumerate(backbone_ws):
        s = 2 ** i
        pooled = image.reshape(N, Cin, H // s, s, W // s, s).mean(axis=(3, 5))
        f = jnp.einsum('nchw,cd->ndhw', pooled, wb)      # (N, C_i, Hs, Ws)
        feats.append(jnp.tanh(f))
    return feats


# ----------------------------------------------------------------------------
# InputEmbed.forward
# ----------------------------------------------------------------------------
def input_embed_forward(image, x, params, do_clus=True):
    if do_clus:
        batch, clus, pts_num, xy = x.shape
        x = x.reshape(batch, clus * pts_num, xy)

    img_feats = standin_backbone(image, params['backbone_w'])

    factor = jnp.array([1.0, 1.0], dtype=x.dtype).reshape(1, 1, 2)
    xy_norm = (x * factor).astype(jnp.float32)

    N, P, _ = xy_norm.shape
    p_tile = min(256, _round_up(max(P, 8), 8))
    P_pad = _round_up(max(P, 8), p_tile)
    # Padded (dummy) points: their rows are garbage but are sliced off below.
    pts = jnp.pad(xy_norm, ((0, 0), (0, P_pad - P), (0, 0)),
                  constant_values=-2.0)

    w_bottleneck = params['bottleneck_w']          # (D, sum(C_i)) PyTorch layout
    b_bottleneck = params['bottleneck_b']          # (D,)
    D = w_bottleneck.shape[0]
    d_pad = _round_up(D, 128)                      # lane-dense kernel output

    # Generation-aware tile / scoped-VMEM budget (conservative if unknown).
    vmem_cap = _vmem_capacity_bytes()
    if vmem_cap > 64 * 1024 * 1024:                # v5e / v6e (128 MiB VMEM)
        max_hw_tile, vmem_limit = 1024, 64 * 1024 * 1024
    else:                                          # v7x (64 MiB per TensorCore)
        max_hw_tile, vmem_limit = 512, 40 * 1024 * 1024

    # TODO(synk): for production HRNet resolutions the finest scales should use
    # a bucketed (scalar-prefetch) or gather-based sampling path to remove the
    # P x HW scaling; not implemented here.
    out = None
    c_off = 0
    for feat in img_feats:
        C, H, W = feat.shape[1], feat.shape[2], feat.shape[3]
        tgts, wgts = _corner_tables(pts, H, W)
        w_slice = jnp.transpose(w_bottleneck[:, c_off:c_off + C])   # (C, D)
        out = sample_project_scale(tgts, wgts, feat, w_slice, out,
                                   d_pad=d_pad, p_tile=p_tile,
                                   max_hw_tile=max_hw_tile,
                                   vmem_limit=vmem_limit)
        c_off += C

    out = out[:, :P, :D] + b_bottleneck[None, None, :]
    if do_clus:
        out = out.reshape(batch, clus, pts_num, D)
    return out


# ----------------------------------------------------------------------------
# Pure-JAX f32 reference (for correctness check only).
# ----------------------------------------------------------------------------
def _ref_grid_sample(feat, grid):
    # feat (N, C, H, W), grid (N, P, 2) in [-1,1]; bilinear, zeros, align_corners=True
    N, C, H, W = feat.shape
    gx, gy = grid[..., 0], grid[..., 1]
    ix = (gx + 1.0) * 0.5 * (W - 1)
    iy = (gy + 1.0) * 0.5 * (H - 1)
    x0 = jnp.floor(ix).astype(jnp.int32)
    y0 = jnp.floor(iy).astype(jnp.int32)
    x1, y1 = x0 + 1, y0 + 1
    wx1 = ix - x0.astype(ix.dtype)
    wx0 = 1.0 - wx1
    wy1 = iy - y0.astype(iy.dtype)
    wy0 = 1.0 - wy1
    flat = feat.reshape(N, C, H * W)

    def gather(yc, xc):
        valid = ((yc >= 0) & (yc < H) & (xc >= 0) & (xc < W)).astype(feat.dtype)
        idx = jnp.clip(yc, 0, H - 1) * W + jnp.clip(xc, 0, W - 1)
        g = jnp.take_along_axis(flat, idx[:, None, :], axis=2)       # (N, C, P)
        return g * valid[:, None, :]

    out = (gather(y0, x0) * (wy0 * wx0)[:, None, :]
           + gather(y0, x1) * (wy0 * wx1)[:, None, :]
           + gather(y1, x0) * (wy1 * wx0)[:, None, :]
           + gather(y1, x1) * (wy1 * wx1)[:, None, :])
    return jnp.transpose(out, (0, 2, 1))                             # (N, P, C)


def reference_forward(image, x, params, do_clus=True):
    if do_clus:
        batch, clus, pts_num, xy = x.shape
        x = x.reshape(batch, clus * pts_num, xy)
    feats = standin_backbone(image, params['backbone_w'])
    xy_norm = x * jnp.array([1.0, 1.0], dtype=x.dtype).reshape(1, 1, 2)
    sampled = jnp.concatenate([_ref_grid_sample(f, xy_norm) for f in feats], axis=2)
    out = sampled @ params['bottleneck_w'].T + params['bottleneck_b']
    if do_clus:
        out = out.reshape(batch, clus, pts_num, -1)
    return out


# ----------------------------------------------------------------------------
def make_params(key):
    ks = jax.random.split(key, len(FEAT_DIMS) + 1)
    backbone_w = [0.1 * jax.random.normal(ks[i], (3, c), jnp.float32)
                  for i, c in enumerate(FEAT_DIMS)]
    # nn.init.normal_(weight, std=0.01); bias = 0
    bottleneck_w = 0.01 * jax.random.normal(
        ks[-1], (INPUT_EMBED_DIM, sum(FEAT_DIMS)), jnp.float32)
    bottleneck_b = jnp.zeros((INPUT_EMBED_DIM,), jnp.float32)
    return dict(backbone_w=backbone_w,
                bottleneck_w=bottleneck_w,
                bottleneck_b=bottleneck_b)


if __name__ == "__main__":
    key = jax.random.PRNGKey(0)
    k_img, k_pts, k_par = jax.random.split(key, 3)

    batch, clus, pts_num = 2, 2, 4           # P = clus * pts_num = 8
    H = W = 16
    image = jax.random.normal(k_img, (batch, 3, H, W), jnp.float32)   # NCHW
    x = jax.random.uniform(k_pts, (batch, clus, pts_num, 2), jnp.float32,
                           minval=-1.0, maxval=1.0)

    params = make_params(k_par)

    fwd = jax.jit(functools.partial(input_embed_forward, do_clus=True))
    out = jax.block_until_ready(fwd(image, x, params))
    ref = jax.block_until_ready(reference_forward(image, x, params, do_clus=True))

    assert out.shape == (batch, clus, pts_num, INPUT_EMBED_DIM), out.shape
    # bf16 feature cast + bf16 MXU operands in both matmuls introduce ~1e-3 abs
    # error vs. the pure-f32 reference; bilinear/mask math stays f32.
    max_err = float(jnp.max(jnp.abs(out - ref)))
    assert jnp.allclose(out, ref, atol=1e-2, rtol=5e-2), max_err

    print("KERNEL_OK")
</pallas_src>

<mosaic_0001>
module attributes {stable_mosaic.version = 11 : i64} {
  func.func @_scale_kernel(%arg0: i32, %arg1: i32, %arg2: i32, %arg3: memref<1x8x4xi32, #tpu.memory_space<vmem>>, %arg4: memref<1x8x4xf32, #tpu.memory_space<vmem>>, %arg5: memref<1x8x256xbf16, #tpu.memory_space<vmem>>, %arg6: memref<8x128xbf16, #tpu.memory_space<vmem>>, %arg7: memref<1x8x128xf32, #tpu.memory_space<vmem>>) attributes {dimension_semantics = [#tpu.dimension_semantics<parallel>, #tpu.dimension_semantics<parallel>, #tpu.dimension_semantics<arbitrary>], iteration_bounds = array<i64: 2, 1, 1>, scalar_prefetch = 0 : i64, scratch_operands = 0 : i64, tpu.core_type = #tpu.core_type<tc>, window_params = [{transform_indices = @transform_0, window_bounds = array<i64: 1, 8, 4>}, {transform_indices = @transform_1, window_bounds = array<i64: 1, 8, 4>}, {transform_indices = @transform_2, window_bounds = array<i64: 1, 8, 256>}, {pipeline_mode = #tpu.pipeline_mode<synchronous>, transform_indices = @transform_3, window_bounds = array<i64: 8, 128>}, {transform_indices = @transform_4, window_bounds = array<i64: 1, 8, 128>}]} {
    %c0_i32 = arith.constant 0 : i32
    %0 = arith.cmpi eq, %arg2, %c0_i32 : i32
    %1 = arith.extui %0 : i1 to i32
    %c0_i32_0 = arith.constant 0 : i32
    %2 = arith.cmpi ne, %1, %c0_i32_0 : i32
    scf.if %2 {
      %cst_22 = arith.constant 0.000000e+00 : f32
      %59 = vector.broadcast %cst_22 : f32 to vector<1x8x128xf32>
      %c0_23 = arith.constant 0 : index
      %c0_24 = arith.constant 0 : index
      %c0_25 = arith.constant 0 : index
      %60 = vector.load %arg7[%c0_23, %c0_24, %c0_25] : memref<1x8x128xf32, #tpu.memory_space<vmem>>, vector<1x8x128xf32>
      tpu.vector_store %arg7[%c0_23, %c0_24, %c0_25], %59 {strides = array<i32>} : memref<1x8x128xf32, #tpu.memory_space<vmem>>, vector<1x8x128xf32>,
    } else {
    }
    %c0 = arith.constant 0 : index
    %c0_1 = arith.constant 0 : index
    %c0_2 = arith.constant 0 : index
    %3 = vector.load %arg5[%c0, %c0_1, %c0_2] : memref<1x8x256xbf16, #tpu.memory_space<vmem>>, vector<1x8x256xbf16>
    %4 = vector.shape_cast %3 : vector<1x8x256xbf16> to vector<8x256xbf16>
    %c0_3 = arith.constant 0 : index
    %c0_4 = arith.constant 0 : index
    %5 = vector.load %arg6[%c0_3, %c0_4] : memref<8x128xbf16, #tpu.memory_space<vmem>>, vector<8x128xbf16>
    %cst = arith.constant dense<0.000000e+00> : vector<256x128xf32>
    %6 = tpu.matmul %4, %5, %cst {dimension_numbers = #tpu.dot_dimension_numbers<[0], [0], [1], [1], [0, 1, 1, 1], [], []>} : vector<8x256xbf16>, vector<8x128xbf16>, vector<256x128xf32> -> vector<256x128xf32>
    %7 = arith.truncf %6 : vector<256x128xf32> to vector<256x128xbf16>
    %c256_i32 = arith.constant 256 : i32
    %8 = arith.muli %arg2, %c256_i32 : i32
    %9 = tpu.iota {dimensions = array<i32: 1>} : vector<8x256xi32>
    %10 = vector.broadcast %8 : i32 to vector<8x256xi32>
    %11 = arith.addi %9, %10 : vector<8x256xi32>
    %c0_5 = arith.constant 0 : index
    %c0_6 = arith.constant 0 : index
    %c0_7 = arith.constant 0 : index
    %12 = vector.load %arg3[%c0_5, %c0_6, %c0_7] : memref<1x8x4xi32, #tpu.memory_space<vmem>>, vector<1x8x4xi32>
    %13 = vector.shape_cast %12 : vector<1x8x4xi32> to vector<8x4xi32>
    %c0_8 = arith.constant 0 : index
    %c0_9 = arith.constant 0 : index
    %c0_10 = arith.constant 0 : index
    %14 = vector.load %arg4[%c0_8, %c0_9, %c0_10] : memref<1x8x4xf32, #tpu.memory_space<vmem>>, vector<1x8x4xf32>
    %15 = vector.shape_cast %14 : vector<1x8x4xf32> to vector<8x4xf32>
    %16 = vector.extract_strided_slice %13 {offsets = [0, 0], sizes = [8, 1], strides = [1, 1]} : vector<8x4xi32> to vector<8x1xi32>
    %17 = vector.broadcast %16 : vector<8x1xi32> to vector<8x256xi32>
    %18 = arith.cmpi eq, %11, %17 : vector<8x256xi32>
    %19 = vector.extract_strided_slice %15 {offsets = [0, 0], sizes = [8, 1], strides = [1, 1]} : vector<8x4xf32> to vector<8x1xf32>
    %cst_11 = arith.constant 0.000000e+00 : f32
    %20 = vector.shape_cast %19 : vector<8x1xf32> to vector<8x1xf32>
    %21 = vector.broadcast %20 : vector<8x1xf32> to vector<8x256xf32>
    %22 = vector.broadcast %cst_11 : f32 to vector<8x256xf32>
    %23 = arith.select %18, %21, %22 : vector<8x256xi1>, vector<8x256xf32>
    %24 = vector.extract_strided_slice %13 {offsets = [0, 1], sizes = [8, 1], strides = [1, 1]} : vector<8x4xi32> to vector<8x1xi32>
    %25 = vector.broadcast %24 : vector<8x1xi32> to vector<8x256xi32>
    %26 = arith.cmpi eq, %11, %25 : vector<8x256xi32>
    %27 = vector.extract_strided_slice %15 {offsets = [0, 1], sizes = [8, 1], strides = [1, 1]} : vector<8x4xf32> to vector<8x1xf32>
    %cst_12 = arith.constant 0.000000e+00 : f32
    %28 = vector.shape_cast %27 : vector<8x1xf32> to vector<8x1xf32>
    %29 = vector.broadcast %28 : vector<8x1xf32> to vector<8x256xf32>
    %30 = vector.broadcast %cst_12 : f32 to vector<8x256xf32>
    %31 = arith.select %26, %29, %30 : vector<8x256xi1>, vector<8x256xf32>
    %32 = arith.addf %23, %31 : vector<8x256xf32>
    %33 = vector.extract_strided_slice %13 {offsets = [0, 2], sizes = [8, 1], strides = [1, 1]} : vector<8x4xi32> to vector<8x1xi32>
    %34 = vector.broadcast %33 : vector<8x1xi32> to vector<8x256xi32>
    %35 = arith.cmpi eq, %11, %34 : vector<8x256xi32>
    %36 = vector.extract_strided_slice %15 {offsets = [0, 2], sizes = [8, 1], strides = [1, 1]} : vector<8x4xf32> to vector<8x1xf32>
    %cst_13 = arith.constant 0.000000e+00 : f32
    %37 = vector.shape_cast %36 : vector<8x1xf32> to vector<8x1xf32>
    %38 = vector.broadcast %37 : vector<8x1xf32> to vector<8x256xf32>
    %39 = vector.broadcast %cst_13 : f32 to vector<8x256xf32>
    %40 = arith.select %35, %38, %39 : vector<8x256xi1>, vector<8x256xf32>
    %41 = arith.addf %32, %40 : vector<8x256xf32>
    %42 = vector.extract_strided_slice %13 {offsets = [0, 3], sizes = [8, 1], strides = [1, 1]} : vector<8x4xi32> to vector<8x1xi32>
    %43 = vector.broadcast %42 : vector<8x1xi32> to vector<8x256xi32>
    %44 = arith.cmpi eq, %11, %43 : vector<8x256xi32>
    %45 = vector.extract_strided_slice %15 {offsets = [0, 3], sizes = [8, 1], strides = [1, 1]} : vector<8x4xf32> to vector<8x1xf32>
    %cst_14 = arith.constant 0.000000e+00 : f32
    %46 = vector.shape_cast %45 : vector<8x1xf32> to vector<8x1xf32>
    %47 = vector.broadcast %46 : vector<8x1xf32> to vector<8x256xf32>
    %48 = vector.broadcast %cst_14 : f32 to vector<8x256xf32>
    %49 = arith.select %44, %47, %48 : vector<8x256xi1>, vector<8x256xf32>
    %50 = arith.addf %41, %49 : vector<8x256xf32>
    %c0_15 = arith.constant 0 : index
    %c0_16 = arith.constant 0 : index
    %c0_17 = arith.constant 0 : index
    %51 = vector.load %arg7[%c0_15, %c0_16, %c0_17] : memref<1x8x128xf32, #tpu.memory_space<vmem>>, vector<1x8x128xf32>
    %52 = vector.shape_cast %51 : vector<1x8x128xf32> to vector<8x128xf32>
    %53 = arith.truncf %50 : vector<8x256xf32> to vector<8x256xbf16>
    %cst_18 = arith.constant dense<0.000000e+00> : vector<8x128xf32>
    %54 = tpu.matmul %53, %7, %cst_18 {dimension_numbers = #tpu.dot_dimension_numbers<[1], [0], [0], [1], [0, 0, 1, 1], [], []>} : vector<8x256xbf16>, vector<256x128xbf16>, vector<8x128xf32> -> vector<8x128xf32>
    %55 = arith.addf %52, %54 : vector<8x128xf32>
    %c0_19 = arith.constant 0 : index
    %c0_20 = arith.constant 0 : index
    %c0_21 = arith.constant 0 : index
    %56 = vector.load %arg7[%c0_19, %c0_20, %c0_21] : memref<1x8x128xf32, #tpu.memory_space<vmem>>, vector<1x8x128xf32>
    %57 = vector.shape_cast %56 : vector<1x8x128xf32> to vector<8x128xf32>
    %58 = vector.shape_cast %55 : vector<8x128xf32> to vector<1x8x128xf32>
    tpu.vector_store %arg7[%c0_19, %c0_20, %c0_21], %58 {strides = array<i32>} : memref<1x8x128xf32, #tpu.memory_space<vmem>>, vector<1x8x128xf32>,
    return
  }
  func.func @transform_0(%arg0: i32, %arg1: i32, %arg2: i32) -> (i32, i32, i32) {
    %c0_i32 = arith.constant 0 : i32
    %c0_i32_0 = arith.constant 0 : i32
    return %arg0, %arg1, %c0_i32 : i32, i32, i32
  }
  func.func @transform_1(%arg0: i32, %arg1: i32, %arg2: i32) -> (i32, i32, i32) {
    %c0_i32 = arith.constant 0 : i32
    %c0_i32_0 = arith.constant 0 : i32
    return %arg0, %arg1, %c0_i32 : i32, i32, i32
  }
  func.func @transform_2(%arg0: i32, %arg1: i32, %arg2: i32) -> (i32, i32, i32) {
    %c0_i32 = arith.constant 0 : i32
    %c0_i32_0 = arith.constant 0 : i32
    return %arg0, %c0_i32, %arg2 : i32, i32, i32
  }
  func.func @transform_3(%arg0: i32, %arg1: i32, %arg2: i32) -> (i32, i32) {
    %c0_i32 = arith.constant 0 : i32
    %c0_i32_0 = arith.constant 0 : i32
    %c0_i32_1 = arith.constant 0 : i32
    return %c0_i32, %c0_i32_0 : i32, i32
  }
  func.func @transform_4(%arg0: i32, %arg1: i32, %arg2: i32) -> (i32, i32, i32) {
    %c0_i32 = arith.constant 0 : i32
    %c0_i32_0 = arith.constant 0 : i32
    return %arg0, %arg1, %c0_i32 : i32, i32, i32
  }
}

module attributes {stable_mosaic.version = 11 : i64} {
  func.func @_scale_kernel(%arg0: i32, %arg1: i32, %arg2: i32, %arg3: memref<1x8x4xi32, #tpu.memory_space<vmem>>, %arg4: memref<1x8x4xf32, #tpu.memory_space<vmem>>, %arg5: memref<1x32x128xbf16, #tpu.memory_space<vmem>>, %arg6: memref<32x128xbf16, #tpu.memory_space<vmem>>, %arg7: memref<1x8x128xf32, #tpu.memory_space<vmem>>, %arg8: memref<1x8x128xf32, #tpu.memory_space<vmem>>) attributes {dimension_semantics = [#tpu.dimension_semantics<parallel>, #tpu.dimension_semantics<parallel>, #tpu.dimension_semantics<arbitrary>], iteration_bounds = array<i64: 2, 1, 1>, scalar_prefetch = 0 : i64, scratch_operands = 0 : i64, tpu.core_type = #tpu.core_type<tc>, window_params = [{transform_indices = @transform_0, window_bounds = array<i64: 1, 8, 4>}, {transform_indices = @transform_1, window_bounds = array<i64: 1, 8, 4>}, {transform_indices = @transform_2, window_bounds = array<i64: 1, 32, 128>}, {pipeline_mode = #tpu.pipeline_mode<synchronous>, transform_indices = @transform_3, window_bounds = array<i64: 32, 128>}, {transform_indices = @transform_4, window_bounds = array<i64: 1, 8, 128>}, {transform_indices = @transform_5, window_bounds = array<i64: 1, 8, 128>}]} {
    %c0_i32 = arith.constant 0 : i32
    %0 = arith.cmpi eq, %arg2, %c0_i32 : i32
    %1 = arith.extui %0 : i1 to i32
    %c0_i32_0 = arith.constant 0 : i32
    %2 = arith.cmpi ne, %1, %c0_i32_0 : i32
    scf.if %2 {
      %c0_22 = arith.constant 0 : index
      %c0_23 = arith.constant 0 : index
      %c0_24 = arith.constant 0 : index
      %59 = vector.load %arg7[%c0_22, %c0_23, %c0_24] : memref<1x8x128xf32, #tpu.memory_space<vmem>>, vector<1x8x128xf32>
      %c0_25 = arith.constant 0 : index
      %c0_26 = arith.constant 0 : index
      %c0_27 = arith.constant 0 : index
      %60 = vector.load %arg8[%c0_25, %c0_26, %c0_27] : memref<1x8x128xf32, #tpu.memory_space<vmem>>, vector<1x8x128xf32>
      tpu.vector_store %arg8[%c0_25, %c0_26, %c0_27], %59 {strides = array<i32>} : memref<1x8x128xf32, #tpu.memory_space<vmem>>, vector<1x8x128xf32>,
    } else {
    }
    %c0 = arith.constant 0 : index
    %c0_1 = arith.constant 0 : index
    %c0_2 = arith.constant 0 : index
    %3 = vector.load %arg5[%c0, %c0_1, %c0_2] : memref<1x32x128xbf16, #tpu.memory_space<vmem>>, vector<1x32x128xbf16>
    %4 = vector.shape_cast %3 : vector<1x32x128xbf16> to vector<32x128xbf16>
    %c0_3 = arith.constant 0 : index
    %c0_4 = arith.constant 0 : index
    %5 = vector.load %arg6[%c0_3, %c0_4] : memref<32x128xbf16, #tpu.memory_space<vmem>>, vector<32x128xbf16>
    %cst = arith.constant dense<0.000000e+00> : vector<128x128xf32>
    %6 = tpu.matmul %4, %5, %cst {dimension_numbers = #tpu.dot_dimension_numbers<[0], [0], [1], [1], [0, 1, 1, 1], [], []>} : vector<32x128xbf16>, vector<32x128xbf16>, vector<128x128xf32> -> vector<128x128xf32>
    %7 = arith.truncf %6 : vector<128x128xf32> to vector<128x128xbf16>
    %c128_i32 = arith.constant 128 : i32
    %8 = arith.muli %arg2, %c128_i32 : i32
    %9 = tpu.iota {dimensions = array<i32: 1>} : vector<8x128xi32>
    %10 = vector.broadcast %8 : i32 to vector<8x128xi32>
    %11 = arith.addi %9, %10 : vector<8x128xi32>
    %c0_5 = arith.constant 0 : index
    %c0_6 = arith.constant 0 : index
    %c0_7 = arith.constant 0 : index
    %12 = vector.load %arg3[%c0_5, %c0_6, %c0_7] : memref<1x8x4xi32, #tpu.memory_space<vmem>>, vector<1x8x4xi32>
    %13 = vector.shape_cast %12 : vector<1x8x4xi32> to vector<8x4xi32>
    %c0_8 = arith.constant 0 : index
    %c0_9 = arith.constant 0 : index
    %c0_10 = arith.constant 0 : index
    %14 = vector.load %arg4[%c0_8, %c0_9, %c0_10] : memref<1x8x4xf32, #tpu.memory_space<vmem>>, vector<1x8x4xf32>
    %15 = vector.shape_cast %14 : vector<1x8x4xf32> to vector<8x4xf32>
    %16 = vector.extract_strided_slice %13 {offsets = [0, 0], sizes = [8, 1], strides = [1, 1]} : vector<8x4xi32> to vector<8x1xi32>
    %17 = vector.broadcast %16 : vector<8x1xi32> to vector<8x128xi32>
    %18 = arith.cmpi eq, %11, %17 : vector<8x128xi32>
    %19 = vector.extract_strided_slice %15 {offsets = [0, 0], sizes = [8, 1], strides = [1, 1]} : vector<8x4xf32> to vector<8x1xf32>
    %cst_11 = arith.constant 0.000000e+00 : f32
    %20 = vector.shape_cast %19 : vector<8x1xf32> to vector<8x1xf32>
    %21 = vector.broadcast %20 : vector<8x1xf32> to vector<8x128xf32>
    %22 = vector.broadcast %cst_11 : f32 to vector<8x128xf32>
    %23 = arith.select %18, %21, %22 : vector<8x128xi1>, vector<8x128xf32>
    %24 = vector.extract_strided_slice %13 {offsets = [0, 1], sizes = [8, 1], strides = [1, 1]} : vector<8x4xi32> to vector<8x1xi32>
    %25 = vector.broadcast %24 : vector<8x1xi32> to vector<8x128xi32>
    %26 = arith.cmpi eq, %11, %25 : vector<8x128xi32>
    %27 = vector.extract_strided_slice %15 {offsets = [0, 1], sizes = [8, 1], strides = [1, 1]} : vector<8x4xf32> to vector<8x1xf32>
    %cst_12 = arith.constant 0.000000e+00 : f32
    %28 = vector.shape_cast %27 : vector<8x1xf32> to vector<8x1xf32>
    %29 = vector.broadcast %28 : vector<8x1xf32> to vector<8x128xf32>
    %30 = vector.broadcast %cst_12 : f32 to vector<8x128xf32>
    %31 = arith.select %26, %29, %30 : vector<8x128xi1>, vector<8x128xf32>
    %32 = arith.addf %23, %31 : vector<8x128xf32>
    %33 = vector.extract_strided_slice %13 {offsets = [0, 2], sizes = [8, 1], strides = [1, 1]} : vector<8x4xi32> to vector<8x1xi32>
    %34 = vector.broadcast %33 : vector<8x1xi32> to vector<8x128xi32>
    %35 = arith.cmpi eq, %11, %34 : vector<8x128xi32>
    %36 = vector.extract_strided_slice %15 {offsets = [0, 2], sizes = [8, 1], strides = [1, 1]} : vector<8x4xf32> to vector<8x1xf32>
    %cst_13 = arith.constant 0.000000e+00 : f32
    %37 = vector.shape_cast %36 : vector<8x1xf32> to vector<8x1xf32>
    %38 = vector.broadcast %37 : vector<8x1xf32> to vector<8x128xf32>
    %39 = vector.broadcast %cst_13 : f32 to vector<8x128xf32>
    %40 = arith.select %35, %38, %39 : vector<8x128xi1>, vector<8x128xf32>
    %41 = arith.addf %32, %40 : vector<8x128xf32>
    %42 = vector.extract_strided_slice %13 {offsets = [0, 3], sizes = [8, 1], strides = [1, 1]} : vector<8x4xi32> to vector<8x1xi32>
    %43 = vector.broadcast %42 : vector<8x1xi32> to vector<8x128xi32>
    %44 = arith.cmpi eq, %11, %43 : vector<8x128xi32>
    %45 = vector.extract_strided_slice %15 {offsets = [0, 3], sizes = [8, 1], strides = [1, 1]} : vector<8x4xf32> to vector<8x1xf32>
    %cst_14 = arith.constant 0.000000e+00 : f32
    %46 = vector.shape_cast %45 : vector<8x1xf32> to vector<8x1xf32>
    %47 = vector.broadcast %46 : vector<8x1xf32> to vector<8x128xf32>
    %48 = vector.broadcast %cst_14 : f32 to vector<8x128xf32>
    %49 = arith.select %44, %47, %48 : vector<8x128xi1>, vector<8x128xf32>
    %50 = arith.addf %41, %49 : vector<8x128xf32>
    %c0_15 = arith.constant 0 : index
    %c0_16 = arith.constant 0 : index
    %c0_17 = arith.constant 0 : index
    %51 = vector.load %arg8[%c0_15, %c0_16, %c0_17] : memref<1x8x128xf32, #tpu.memory_space<vmem>>, vector<1x8x128xf32>
    %52 = vector.shape_cast %51 : vector<1x8x128xf32> to vector<8x128xf32>
    %53 = arith.truncf %50 : vector<8x128xf32> to vector<8x128xbf16>
    %cst_18 = arith.constant dense<0.000000e+00> : vector<8x128xf32>
    %54 = tpu.matmul %53, %7, %cst_18 {dimension_numbers = #tpu.dot_dimension_numbers<[1], [0], [0], [1], [0, 0, 1, 1], [], []>} : vector<8x128xbf16>, vector<128x128xbf16>, vector<8x128xf32> -> vector<8x128xf32>
    %55 = arith.addf %52, %54 : vector<8x128xf32>
    %c0_19 = arith.constant 0 : index
    %c0_20 = arith.constant 0 : index
    %c0_21 = arith.constant 0 : index
    %56 = vector.load %arg8[%c0_19, %c0_20, %c0_21] : memref<1x8x128xf32, #tpu.memory_space<vmem>>, vector<1x8x128xf32>
    %57 = vector.shape_cast %56 : vector<1x8x128xf32> to vector<8x128xf32>
    %58 = vector.shape_cast %55 : vector<8x128xf32> to vector<1x8x128xf32>
    tpu.vector_store %arg8[%c0_19, %c0_20, %c0_21], %58 {strides = array<i32>} : memref<1x8x128xf32, #tpu.memory_space<vmem>>, vector<1x8x128xf32>,
    return
  }
  func.func @transform_0(%arg0: i32, %arg1: i32, %arg2: i32) -> (i32, i32, i32) {
    %c0_i32 = arith.constant 0 : i32
    %c0_i32_0 = arith.constant 0 : i32
    return %arg0, %arg1, %c0_i32 : i32, i32, i32
  }
  func.func @transform_1(%arg0: i32, %arg1: i32, %arg2: i32) -> (i32, i32, i32) {
    %c0_i32 = arith.constant 0 : i32
    %c0_i32_0 = arith.constant 0 : i32
    return %arg0, %arg1, %c0_i32 : i32, i32, i32
  }
  func.func @transform_2(%arg0: i32, %arg1: i32, %arg2: i32) -> (i32, i32, i32) {
    %c0_i32 = arith.constant 0 : i32
    %c0_i32_0 = arith.constant 0 : i32
    return %arg0, %c0_i32, %arg2 : i32, i32, i32
  }
  func.func @transform_3(%arg0: i32, %arg1: i32, %arg2: i32) -> (i32, i32) {
    %c0_i32 = arith.constant 0 : i32
    %c0_i32_0 = arith.constant 0 : i32
    %c0_i32_1 = arith.constant 0 : i32
    return %c0_i32, %c0_i32_0 : i32, i32
  }
  func.func @transform_4(%arg0: i32, %arg1: i32, %arg2: i32) -> (i32, i32, i32) {
    %c0_i32 = arith.constant 0 : i32
    %c0_i32_0 = arith.constant 0 : i32
    return %arg0, %arg1, %c0_i32 : i32, i32, i32
  }
  func.func @transform_5(%arg0: i32, %arg1: i32, %arg2: i32) -> (i32, i32, i32) {
    %c0_i32 = arith.constant 0 : i32
    %c0_i32_0 = arith.constant 0 : i32
    return %arg0, %arg1, %c0_i32 : i32, i32, i32
  }
}

module attributes {stable_mosaic.version = 11 : i64} {
  func.func @_scale_kernel(%arg0: i32, %arg1: i32, %arg2: i32, %arg3: memref<1x8x4xi32, #tpu.memory_space<vmem>>, %arg4: memref<1x8x4xf32, #tpu.memory_space<vmem>>, %arg5: memref<1x64x128xbf16, #tpu.memory_space<vmem>>, %arg6: memref<64x128xbf16, #tpu.memory_space<vmem>>, %arg7: memref<1x8x128xf32, #tpu.memory_space<vmem>>, %arg8: memref<1x8x128xf32, #tpu.memory_space<vmem>>) attributes {dimension_semantics = [#tpu.dimension_semantics<parallel>, #tpu.dimension_semantics<parallel>, #tpu.dimension_semantics<arbitrary>], iteration_bounds = array<i64: 2, 1, 1>, scalar_prefetch = 0 : i64, scratch_operands = 0 : i64, tpu.core_type = #tpu.core_type<tc>, window_params = [{transform_indices = @transform_0, window_bounds = array<i64: 1, 8, 4>}, {transform_indices = @transform_1, window_bounds = array<i64: 1, 8, 4>}, {transform_indices = @transform_2, window_bounds = array<i64: 1, 64, 128>}, {pipeline_mode = #tpu.pipeline_mode<synchronous>, transform_indices = @transform_3, window_bounds = array<i64: 64, 128>}, {transform_indices = @transform_4, window_bounds = array<i64: 1, 8, 128>}, {transform_indices = @transform_5, window_bounds = array<i64: 1, 8, 128>}]} {
    %c0_i32 = arith.constant 0 : i32
    %0 = arith.cmpi eq, %arg2, %c0_i32 : i32
    %1 = arith.extui %0 : i1 to i32
    %c0_i32_0 = arith.constant 0 : i32
    %2 = arith.cmpi ne, %1, %c0_i32_0 : i32
    scf.if %2 {
      %c0_22 = arith.constant 0 : index
      %c0_23 = arith.constant 0 : index
      %c0_24 = arith.constant 0 : index
      %59 = vector.load %arg7[%c0_22, %c0_23, %c0_24] : memref<1x8x128xf32, #tpu.memory_space<vmem>>, vector<1x8x128xf32>
      %c0_25 = arith.constant 0 : index
      %c0_26 = arith.constant 0 : index
      %c0_27 = arith.constant 0 : index
      %60 = vector.load %arg8[%c0_25, %c0_26, %c0_27] : memref<1x8x128xf32, #tpu.memory_space<vmem>>, vector<1x8x128xf32>
      tpu.vector_store %arg8[%c0_25, %c0_26, %c0_27], %59 {strides = array<i32>} : memref<1x8x128xf32, #tpu.memory_space<vmem>>, vector<1x8x128xf32>,
    } else {
    }
    %c0 = arith.constant 0 : index
    %c0_1 = arith.constant 0 : index
    %c0_2 = arith.constant 0 : index
    %3 = vector.load %arg5[%c0, %c0_1, %c0_2] : memref<1x64x128xbf16, #tpu.memory_space<vmem>>, vector<1x64x128xbf16>
    %4 = vector.shape_cast %3 : vector<1x64x128xbf16> to vector<64x128xbf16>
    %c0_3 = arith.constant 0 : index
    %c0_4 = arith.constant 0 : index
    %5 = vector.load %arg6[%c0_3, %c0_4] : memref<64x128xbf16, #tpu.memory_space<vmem>>, vector<64x128xbf16>
    %cst = arith.constant dense<0.000000e+00> : vector<128x128xf32>
    %6 = tpu.matmul %4, %5, %cst {dimension_numbers = #tpu.dot_dimension_numbers<[0], [0], [1], [1], [0, 1, 1, 1], [], []>} : vector<64x128xbf16>, vector<64x128xbf16>, vector<128x128xf32> -> vector<128x128xf32>
    %7 = arith.truncf %6 : vector<128x128xf32> to vector<128x128xbf16>
    %c128_i32 = arith.constant 128 : i32
    %8 = arith.muli %arg2, %c128_i32 : i32
    %9 = tpu.iota {dimensions = array<i32: 1>} : vector<8x128xi32>
    %10 = vector.broadcast %8 : i32 to vector<8x128xi32>
    %11 = arith.addi %9, %10 : vector<8x128xi32>
    %c0_5 = arith.constant 0 : index
    %c0_6 = arith.constant 0 : index
    %c0_7 = arith.constant 0 : index
    %12 = vector.load %arg3[%c0_5, %c0_6, %c0_7] : memref<1x8x4xi32, #tpu.memory_space<vmem>>, vector<1x8x4xi32>
    %13 = vector.shape_cast %12 : vector<1x8x4xi32> to vector<8x4xi32>
    %c0_8 = arith.constant 0 : index
    %c0_9 = arith.constant 0 : index
    %c0_10 = arith.constant 0 : index
    %14 = vector.load %arg4[%c0_8, %c0_9, %c0_10] : memref<1x8x4xf32, #tpu.memory_space<vmem>>, vector<1x8x4xf32>
    %15 = vector.shape_cast %14 : vector<1x8x4xf32> to vector<8x4xf32>
    %16 = vector.extract_strided_slice %13 {offsets = [0, 0], sizes = [8, 1], strides = [1, 1]} : vector<8x4xi32> to vector<8x1xi32>
    %17 = vector.broadcast %16 : vector<8x1xi32> to vector<8x128xi32>
    %18 = arith.cmpi eq, %11, %17 : vector<8x128xi32>
    %19 = vector.extract_strided_slice %15 {offsets = [0, 0], sizes = [8, 1], strides = [1, 1]} : vector<8x4xf32> to vector<8x1xf32>
    %cst_11 = arith.constant 0.000000e+00 : f32
    %20 = vector.shape_cast %19 : vector<8x1xf32> to vector<8x1xf32>
    %21 = vector.broadcast %20 : vector<8x1xf32> to vector<8x128xf32>
    %22 = vector.broadcast %cst_11 : f32 to vector<8x128xf32>
    %23 = arith.select %18, %21, %22 : vector<8x128xi1>, vector<8x128xf32>
    %24 = vector.extract_strided_slice %13 {offsets = [0, 1], sizes = [8, 1], strides = [1, 1]} : vector<8x4xi32> to vector<8x1xi32>
    %25 = vector.broadcast %24 : vector<8x1xi32> to vector<8x128xi32>
    %26 = arith.cmpi eq, %11, %25 : vector<8x128xi32>
    %27 = vector.extract_strided_slice %15 {offsets = [0, 1], sizes = [8, 1], strides = [1, 1]} : vector<8x4xf32> to vector<8x1xf32>
    %cst_12 = arith.constant 0.000000e+00 : f32
    %28 = vector.shape_cast %27 : vector<8x1xf32> to vector<8x1xf32>
    %29 = vector.broadcast %28 : vector<8x1xf32> to vector<8x128xf32>
    %30 = vector.broadcast %cst_12 : f32 to vector<8x128xf32>
    %31 = arith.select %26, %29, %30 : vector<8x128xi1>, vector<8x128xf32>
    %32 = arith.addf %23, %31 : vector<8x128xf32>
    %33 = vector.extract_strided_slice %13 {offsets = [0, 2], sizes = [8, 1], strides = [1, 1]} : vector<8x4xi32> to vector<8x1xi32>
    %34 = vector.broadcast %33 : vector<8x1xi32> to vector<8x128xi32>
    %35 = arith.cmpi eq, %11, %34 : vector<8x128xi32>
    %36 = vector.extract_strided_slice %15 {offsets = [0, 2], sizes = [8, 1], strides = [1, 1]} : vector<8x4xf32> to vector<8x1xf32>
    %cst_13 = arith.constant 0.000000e+00 : f32
    %37 = vector.shape_cast %36 : vector<8x1xf32> to vector<8x1xf32>
    %38 = vector.broadcast %37 : vector<8x1xf32> to vector<8x128xf32>
    %39 = vector.broadcast %cst_13 : f32 to vector<8x128xf32>
    %40 = arith.select %35, %38, %39 : vector<8x128xi1>, vector<8x128xf32>
    %41 = arith.addf %32, %40 : vector<8x128xf32>
    %42 = vector.extract_strided_slice %13 {offsets = [0, 3], sizes = [8, 1], strides = [1, 1]} : vector<8x4xi32> to vector<8x1xi32>
    %43 = vector.broadcast %42 : vector<8x1xi32> to vector<8x128xi32>
    %44 = arith.cmpi eq, %11, %43 : vector<8x128xi32>
    %45 = vector.extract_strided_slice %15 {offsets = [0, 3], sizes = [8, 1], strides = [1, 1]} : vector<8x4xf32> to vector<8x1xf32>
    %cst_14 = arith.constant 0.000000e+00 : f32
    %46 = vector.shape_cast %45 : vector<8x1xf32> to vector<8x1xf32>
    %47 = vector.broadcast %46 : vector<8x1xf32> to vector<8x128xf32>
    %48 = vector.broadcast %cst_14 : f32 to vector<8x128xf32>
    %49 = arith.select %44, %47, %48 : vector<8x128xi1>, vector<8x128xf32>
    %50 = arith.addf %41, %49 : vector<8x128xf32>
    %c0_15 = arith.constant 0 : index
    %c0_16 = arith.constant 0 : index
    %c0_17 = arith.constant 0 : index
    %51 = vector.load %arg8[%c0_15, %c0_16, %c0_17] : memref<1x8x128xf32, #tpu.memory_space<vmem>>, vector<1x8x128xf32>
    %52 = vector.shape_cast %51 : vector<1x8x128xf32> to vector<8x128xf32>
    %53 = arith.truncf %50 : vector<8x128xf32> to vector<8x128xbf16>
    %cst_18 = arith.constant dense<0.000000e+00> : vector<8x128xf32>
    %54 = tpu.matmul %53, %7, %cst_18 {dimension_numbers = #tpu.dot_dimension_numbers<[1], [0], [0], [1], [0, 0, 1, 1], [], []>} : vector<8x128xbf16>, vector<128x128xbf16>, vector<8x128xf32> -> vector<8x128xf32>
    %55 = arith.addf %52, %54 : vector<8x128xf32>
    %c0_19 = arith.constant 0 : index
    %c0_20 = arith.constant 0 : index
    %c0_21 = arith.constant 0 : index
    %56 = vector.load %arg8[%c0_19, %c0_20, %c0_21] : memref<1x8x128xf32, #tpu.memory_space<vmem>>, vector<1x8x128xf32>
    %57 = vector.shape_cast %56 : vector<1x8x128xf32> to vector<8x128xf32>
    %58 = vector.shape_cast %55 : vector<8x128xf32> to vector<1x8x128xf32>
    tpu.vector_store %arg8[%c0_19, %c0_20, %c0_21], %58 {strides = array<i32>} : memref<1x8x128xf32, #tpu.memory_space<vmem>>, vector<1x8x128xf32>,
    return
  }
  func.func @transform_0(%arg0: i32, %arg1: i32, %arg2: i32) -> (i32, i32, i32) {
    %c0_i32 = arith.constant 0 : i32
    %c0_i32_0 = arith.constant 0 : i32
    return %arg0, %arg1, %c0_i32 : i32, i32, i32
  }
  func.func @transform_1(%arg0: i32, %arg1: i32, %arg2: i32) -> (i32, i32, i32) {
    %c0_i32 = arith.constant 0 : i32
    %c0_i32_0 = arith.constant 0 : i32
    return %arg0, %arg1, %c0_i32 : i32, i32, i32
  }
  func.func @transform_2(%arg0: i32, %arg1: i32, %arg2: i32) -> (i32, i32, i32) {
    %c0_i32 = arith.constant 0 : i32
    %c0_i32_0 = arith.constant 0 : i32
    return %arg0, %c0_i32, %arg2 : i32, i32, i32
  }
  func.func @transform_3(%arg0: i32, %arg1: i32, %arg2: i32) -> (i32, i32) {
    %c0_i32 = arith.constant 0 : i32
    %c0_i32_0 = arith.constant 0 : i32
    %c0_i32_1 = arith.constant 0 : i32
    return %c0_i32, %c0_i32_0 : i32, i32
  }
  func.func @transform_4(%arg0: i32, %arg1: i32, %arg2: i32) -> (i32, i32, i32) {
    %c0_i32 = arith.constant 0 : i32
    %c0_i32_0 = arith.constant 0 : i32
    return %arg0, %arg1, %c0_i32 : i32, i32, i32
  }
  func.func @transform_5(%arg0: i32, %arg1: i32, %arg2: i32) -> (i32, i32, i32) {
    %c0_i32 = arith.constant 0 : i32
    %c0_i32_0 = arith.constant 0 : i32
    return %arg0, %arg1, %c0_i32 : i32, i32, i32
  }
}

module attributes {stable_mosaic.version = 11 : i64} {
  func.func @_scale_kernel(%arg0: i32, %arg1: i32, %arg2: i32, %arg3: memref<1x8x4xi32, #tpu.memory_space<vmem>>, %arg4: memref<1x8x4xf32, #tpu.memory_space<vmem>>, %arg5: memref<1x16x128xbf16, #tpu.memory_space<vmem>>, %arg6: memref<16x128xbf16, #tpu.memory_space<vmem>>, %arg7: memref<1x8x128xf32, #tpu.memory_space<vmem>>, %arg8: memref<1x8x128xf32, #tpu.memory_space<vmem>>) attributes {dimension_semantics = [#tpu.dimension_semantics<parallel>, #tpu.dimension_semantics<parallel>, #tpu.dimension_semantics<arbitrary>], iteration_bounds = array<i64: 2, 1, 1>, scalar_prefetch = 0 : i64, scratch_operands = 0 : i64, tpu.core_type = #tpu.core_type<tc>, window_params = [{transform_indices = @transform_0, window_bounds = array<i64: 1, 8, 4>}, {transform_indices = @transform_1, window_bounds = array<i64: 1, 8, 4>}, {transform_indices = @transform_2, window_bounds = array<i64: 1, 16, 128>}, {pipeline_mode = #tpu.pipeline_mode<synchronous>, transform_indices = @transform_3, window_bounds = array<i64: 16, 128>}, {transform_indices = @transform_4, window_bounds = array<i64: 1, 8, 128>}, {transform_indices = @transform_5, window_bounds = array<i64: 1, 8, 128>}]} {
    %c0_i32 = arith.constant 0 : i32
    %0 = arith.cmpi eq, %arg2, %c0_i32 : i32
    %1 = arith.extui %0 : i1 to i32
    %c0_i32_0 = arith.constant 0 : i32
    %2 = arith.cmpi ne, %1, %c0_i32_0 : i32
    scf.if %2 {
      %c0_22 = arith.constant 0 : index
      %c0_23 = arith.constant 0 : index
      %c0_24 = arith.constant 0 : index
      %59 = vector.load %arg7[%c0_22, %c0_23, %c0_24] : memref<1x8x128xf32, #tpu.memory_space<vmem>>, vector<1x8x128xf32>
      %c0_25 = arith.constant 0 : index
      %c0_26 = arith.constant 0 : index
      %c0_27 = arith.constant 0 : index
      %60 = vector.load %arg8[%c0_25, %c0_26, %c0_27] : memref<1x8x128xf32, #tpu.memory_space<vmem>>, vector<1x8x128xf32>
      tpu.vector_store %arg8[%c0_25, %c0_26, %c0_27], %59 {strides = array<i32>} : memref<1x8x128xf32, #tpu.memory_space<vmem>>, vector<1x8x128xf32>,
    } else {
    }
    %c0 = arith.constant 0 : index
    %c0_1 = arith.constant 0 : index
    %c0_2 = arith.constant 0 : index
    %3 = vector.load %arg5[%c0, %c0_1, %c0_2] : memref<1x16x128xbf16, #tpu.memory_space<vmem>>, vector<1x16x128xbf16>
    %4 = vector.shape_cast %3 : vector<1x16x128xbf16> to vector<16x128xbf16>
    %c0_3 = arith.constant 0 : index
    %c0_4 = arith.constant 0 : index
    %5 = vector.load %arg6[%c0_3, %c0_4] : memref<16x128xbf16, #tpu.memory_space<vmem>>, vector<16x128xbf16>
    %cst = arith.constant dense<0.000000e+00> : vector<128x128xf32>
    %6 = tpu.matmul %4, %5, %cst {dimension_numbers = #tpu.dot_dimension_numbers<[0], [0], [1], [1], [0, 1, 1, 1], [], []>} : vector<16x128xbf16>, vector<16x128xbf16>, vector<128x128xf32> -> vector<128x128xf32>
    %7 = arith.truncf %6 : vector<128x128xf32> to vector<128x128xbf16>
    %c128_i32 = arith.constant 128 : i32
    %8 = arith.muli %arg2, %c128_i32 : i32
    %9 = tpu.iota {dimensions = array<i32: 1>} : vector<8x128xi32>
    %10 = vector.broadcast %8 : i32 to vector<8x128xi32>
    %11 = arith.addi %9, %10 : vector<8x128xi32>
    %c0_5 = arith.constant 0 : index
    %c0_6 = arith.constant 0 : index
    %c0_7 = arith.constant 0 : index
    %12 = vector.load %arg3[%c0_5, %c0_6, %c0_7] : memref<1x8x4xi32, #tpu.memory_space<vmem>>, vector<1x8x4xi32>
    %13 = vector.shape_cast %12 : vector<1x8x4xi32> to vector<8x4xi32>
    %c0_8 = arith.constant 0 : index
    %c0_9 = arith.constant 0 : index
    %c0_10 = arith.constant 0 : index
    %14 = vector.load %arg4[%c0_8, %c0_9, %c0_10] : memref<1x8x4xf32, #tpu.memory_space<vmem>>, vector<1x8x4xf32>
    %15 = vector.shape_cast %14 : vector<1x8x4xf32> to vector<8x4xf32>
    %16 = vector.extract_strided_slice %13 {offsets = [0, 0], sizes = [8, 1], strides = [1, 1]} : vector<8x4xi32> to vector<8x1xi32>
    %17 = vector.broadcast %16 : vector<8x1xi32> to vector<8x128xi32>
    %18 = arith.cmpi eq, %11, %17 : vector<8x128xi32>
    %19 = vector.extract_strided_slice %15 {offsets = [0, 0], sizes = [8, 1], strides = [1, 1]} : vector<8x4xf32> to vector<8x1xf32>
    %cst_11 = arith.constant 0.000000e+00 : f32
    %20 = vector.shape_cast %19 : vector<8x1xf32> to vector<8x1xf32>
    %21 = vector.broadcast %20 : vector<8x1xf32> to vector<8x128xf32>
    %22 = vector.broadcast %cst_11 : f32 to vector<8x128xf32>
    %23 = arith.select %18, %21, %22 : vector<8x128xi1>, vector<8x128xf32>
    %24 = vector.extract_strided_slice %13 {offsets = [0, 1], sizes = [8, 1], strides = [1, 1]} : vector<8x4xi32> to vector<8x1xi32>
    %25 = vector.broadcast %24 : vector<8x1xi32> to vector<8x128xi32>
    %26 = arith.cmpi eq, %11, %25 : vector<8x128xi32>
    %27 = vector.extract_strided_slice %15 {offsets = [0, 1], sizes = [8, 1], strides = [1, 1]} : vector<8x4xf32> to vector<8x1xf32>
    %cst_12 = arith.constant 0.000000e+00 : f32
    %28 = vector.shape_cast %27 : vector<8x1xf32> to vector<8x1xf32>
    %29 = vector.broadcast %28 : vector<8x1xf32> to vector<8x128xf32>
    %30 = vector.broadcast %cst_12 : f32 to vector<8x128xf32>
    %31 = arith.select %26, %29, %30 : vector<8x128xi1>, vector<8x128xf32>
    %32 = arith.addf %23, %31 : vector<8x128xf32>
    %33 = vector.extract_strided_slice %13 {offsets = [0, 2], sizes = [8, 1], strides = [1, 1]} : vector<8x4xi32> to vector<8x1xi32>
    %34 = vector.broadcast %33 : vector<8x1xi32> to vector<8x128xi32>
    %35 = arith.cmpi eq, %11, %34 : vector<8x128xi32>
    %36 = vector.extract_strided_slice %15 {offsets = [0, 2], sizes = [8, 1], strides = [1, 1]} : vector<8x4xf32> to vector<8x1xf32>
    %cst_13 = arith.constant 0.000000e+00 : f32
    %37 = vector.shape_cast %36 : vector<8x1xf32> to vector<8x1xf32>
    %38 = vector.broadcast %37 : vector<8x1xf32> to vector<8x128xf32>
    %39 = vector.broadcast %cst_13 : f32 to vector<8x128xf32>
    %40 = arith.select %35, %38, %39 : vector<8x128xi1>, vector<8x128xf32>
    %41 = arith.addf %32, %40 : vector<8x128xf32>
    %42 = vector.extract_strided_slice %13 {offsets = [0, 3], sizes = [8, 1], strides = [1, 1]} : vector<8x4xi32> to vector<8x1xi32>
    %43 = vector.broadcast %42 : vector<8x1xi32> to vector<8x128xi32>
    %44 = arith.cmpi eq, %11, %43 : vector<8x128xi32>
    %45 = vector.extract_strided_slice %15 {offsets = [0, 3], sizes = [8, 1], strides = [1, 1]} : vector<8x4xf32> to vector<8x1xf32>
    %cst_14 = arith.constant 0.000000e+00 : f32
    %46 = vector.shape_cast %45 : vector<8x1xf32> to vector<8x1xf32>
    %47 = vector.broadcast %46 : vector<8x1xf32> to vector<8x128xf32>
    %48 = vector.broadcast %cst_14 : f32 to vector<8x128xf32>
    %49 = arith.select %44, %47, %48 : vector<8x128xi1>, vector<8x128xf32>
    %50 = arith.addf %41, %49 : vector<8x128xf32>
    %c0_15 = arith.constant 0 : index
    %c0_16 = arith.constant 0 : index
    %c0_17 = arith.constant 0 : index
    %51 = vector.load %arg8[%c0_15, %c0_16, %c0_17] : memref<1x8x128xf32, #tpu.memory_space<vmem>>, vector<1x8x128xf32>
    %52 = vector.shape_cast %51 : vector<1x8x128xf32> to vector<8x128xf32>
    %53 = arith.truncf %50 : vector<8x128xf32> to vector<8x128xbf16>
    %cst_18 = arith.constant dense<0.000000e+00> : vector<8x128xf32>
    %54 = tpu.matmul %53, %7, %cst_18 {dimension_numbers = #tpu.dot_dimension_numbers<[1], [0], [0], [1], [0, 0, 1, 1], [], []>} : vector<8x128xbf16>, vector<128x128xbf16>, vector<8x128xf32> -> vector<8x128xf32>
    %55 = arith.addf %52, %54 : vector<8x128xf32>
    %c0_19 = arith.constant 0 : index
    %c0_20 = arith.constant 0 : index
    %c0_21 = arith.constant 0 : index
    %56 = vector.load %arg8[%c0_19, %c0_20, %c0_21] : memref<1x8x128xf32, #tpu.memory_space<vmem>>, vector<1x8x128xf32>
    %57 = vector.shape_cast %56 : vector<1x8x128xf32> to vector<8x128xf32>
    %58 = vector.shape_cast %55 : vector<8x128xf32> to vector<1x8x128xf32>
    tpu.vector_store %arg8[%c0_19, %c0_20, %c0_21], %58 {strides = array<i32>} : memref<1x8x128xf32, #tpu.memory_space<vmem>>, vector<1x8x128xf32>,
    return
  }
  func.func @transform_0(%arg0: i32, %arg1: i32, %arg2: i32) -> (i32, i32, i32) {
    %c0_i32 = arith.constant 0 : i32
    %c0_i32_0 = arith.constant 0 : i32
    return %arg0, %arg1, %c0_i32 : i32, i32, i32
  }
  func.func @transform_1(%arg0: i32, %arg1: i32, %arg2: i32) -> (i32, i32, i32) {
    %c0_i32 = arith.constant 0 : i32
    %c0_i32_0 = arith.constant 0 : i32
    return %arg0, %arg1, %c0_i32 : i32, i32, i32
  }
  func.func @transform_2(%arg0: i32, %arg1: i32, %arg2: i32) -> (i32, i32, i32) {
    %c0_i32 = arith.constant 0 : i32
    %c0_i32_0 = arith.constant 0 : i32
    return %arg0, %c0_i32, %arg2 : i32, i32, i32
  }
  func.func @transform_3(%arg0: i32, %arg1: i32, %arg2: i32) -> (i32, i32) {
    %c0_i32 = arith.constant 0 : i32
    %c0_i32_0 = arith.constant 0 : i32
    %c0_i32_1 = arith.constant 0 : i32
    return %c0_i32, %c0_i32_0 : i32, i32
  }
  func.func @transform_4(%arg0: i32, %arg1: i32, %arg2: i32) -> (i32, i32, i32) {
    %c0_i32 = arith.constant 0 : i32
    %c0_i32_0 = arith.constant 0 : i32
    return %arg0, %arg1, %c0_i32 : i32, i32, i32
  }
  func.func @transform_5(%arg0: i32, %arg1: i32, %arg2: i32) -> (i32, i32, i32) {
    %c0_i32 = arith.constant 0 : i32
    %c0_i32_0 = arith.constant 0 : i32
    return %arg0, %arg1, %c0_i32 : i32, i32, i32
  }
}

</mosaic_0001>

<llo_original>
// kernel: input_embed_forward.4
$region0: #{input_embed_forward.4}
  #allocation0 [shape = 'u32[]', space=smem, size = 0x4, offset = 0x4, fixed_abs, tag = 'smem constant byte address 0x4 - core index']
  #allocation1 [shape = 'u32[72,128]{1,0:T(1,128)}', space=vmem, size = 0x9000, scoped, tag = 'internal scratch']
  %s0 = inlined_call_operand.vmem [shape: s32[2,8,4], index: 0, kind: input, shape index: {}]
  %s1 = inlined_call_operand.vmem [shape: f32[2,8,4], index: 1, kind: input, shape index: {}]
  %s2 = inlined_call_operand.vmem [shape: bf16[2,8,256], index: 2, kind: input, shape index: {}]
  %s3 = inlined_call_operand.vmem [shape: bf16[8,128], index: 3, kind: input, shape index: {}]
  %s4 = inlined_call_operand.vmem [shape: f32[2,8,128], index: 4, kind: output, shape index: {}]
  %s5 = sld [smem:[#allocation0]]
  $region53: #{input_embed_forward.4} parent=0
    _
  %s7 = ssub.s32 1, %s5
  %s8 = scalar_select 0, %s7, %s5
  loop: start=0, step=1, limit=4
  $region2: #{input_embed_forward.4} parent=0 // loop_pre_header
    _
  $region3: #{input_embed_forward.4} parent=0 // loop_header
    %s10 = sphi 0, %s14
    %p11 = scmp.ge.s32.totalorder %s10, 4
    %s17 = sphi 0, %s36
    %s18 = sphi 0, %s32
    %s19 = sphi 0, %s28
    %s20 = sphi 0, %s17
    %s21 = sphi 0, %s18
    %s22 = sphi 0, %s19
    %s23 = sphi 0, %s20
    %s24 = sphi 0, %s21
    %s25 = sphi 0, %s22
    %s41 = sphi 0, %s43
    %s44 = sphi 0, %s41
    %s45 = sphi 0, %s44
    %s61 = sphi 0, %s45
    %s69 = sphi 0, %s71
    %s72 = sphi 0, %s69
    %s73 = sphi 0, %s72
    %s89 = sphi 0, %s73
    %s97 = sphi 0, %s99
    %s100 = sphi 0, %s97
    %s101 = sphi 0, %s100
    %s117 = sphi 0, %s101
    %s121 = sphi 0, %s121
    %s123 = sphi 0, %s121
    %s124 = sphi 0, %s123
    %s138 = sphi 0, %s124
    %s146 = sphi 0, %s148
    %s149 = sphi 0, %s146
    %s150 = sphi 0, %s149
    %s166 = sphi 0, %s150
  $region4: #{input_embed_forward.4} parent=0 // loop_header_branch
    %13 = sbr.rel (%p11) target = $region8
  $region5: #{input_embed_forward.4} parent=0 // loop_body
    %s15 = ssub.s32 %s10, 1
    %s16 = ssub.s32 %s10, 2
    %s26 = sadd.s32 1, %s19
    %p27 = scmp.ge.s32.totalorder %s26, 1
    %s28 = scalar_select %p27, 0, %s26
    %s29 = sadd.s32 1, %s18
    %s30 = scalar_select %p27, %s29, %s18
    %p31 = scmp.ge.s32.totalorder %s30, 1
    %s32 = scalar_select %p31, 0, %s30
    %s33 = sadd.s32 1, %s17
    %s34 = scalar_select %p31, %s33, %s17
    %p35 = scmp.ge.s32.totalorder %s34, 2
    %s36 = scalar_select %p35, 0, %s34
    %s37 = ssub.s32 %s17, %s36
    %s38 = ssub.s32 %s18, %s32
    %s39 = sor.u32 %s37, %s38
    %p40 = scmp.eq.s32.totalorder %s39, 0
    %s42 = sadd.s32 %s41, 1
    %s43 = scalar_select %p40, %s41, %s42
    %p46 = pneg %p40
    %p47 = scmp.eq.s32.totalorder %s10, 1
    %p48 = por %p46, %p47
    %p49 = scmp.ne.s32.totalorder %s41, %s44
    %p50 = scmp.eq.s32.totalorder %s10, 0
    %p51 = por %p49, %p50
    %p52 = scmp.ne.s32.totalorder %s41, %s44
    %p53 = scmp.eq.s32.totalorder %s15, 1
    %p54 = por %p52, %p53
    %p55 = scmp.ne.s32.totalorder %s44, %s45
    %p56 = scmp.eq.s32.totalorder %s15, 0
    %p57 = por %p55, %p56
    %p58 = scmp.ne.s32.totalorder %s44, %s45
    %p59 = scmp.eq.s32.totalorder %s16, 1
    %p60 = por %p58, %p59
    %p62 = scmp.ne.s32.totalorder %s45, %s61
    %p63 = scmp.eq.s32.totalorder %s16, 0
    %p64 = por %p62, %p63
    %s65 = ssub.s32 %s17, %s36
    %s66 = ssub.s32 %s18, %s32
    %s67 = sor.u32 %s65, %s66
    %p68 = scmp.eq.s32.totalorder %s67, 0
    %s70 = sadd.s32 %s69, 1
    %s71 = scalar_select %p68, %s69, %s70
    %p74 = pneg %p68
    %p75 = scmp.eq.s32.totalorder %s10, 1
    %p76 = por %p74, %p75
    %p77 = scmp.ne.s32.totalorder %s69, %s72
    %p78 = scmp.eq.s32.totalorder %s10, 0
    %p79 = por %p77, %p78
    %p80 = scmp.ne.s32.totalorder %s69, %s72
    %p81 = scmp.eq.s32.totalorder %s15, 1
    %p82 = por %p80, %p81
    %p83 = scmp.ne.s32.totalorder %s72, %s73
    %p84 = scmp.eq.s32.totalorder %s15, 0
    %p85 = por %p83, %p84
    %p86 = scmp.ne.s32.totalorder %s72, %s73
    %p87 = scmp.eq.s32.totalorder %s16, 1
    %p88 = por %p86, %p87
    %p90 = scmp.ne.s32.totalorder %s73, %s89
    %p91 = scmp.eq.s32.totalorder %s16, 0
    %p92 = por %p90, %p91
    %s93 = ssub.s32 %s17, %s36
    %s94 = ssub.s32 %s19, %s28
    %s95 = sor.u32 %s93, %s94
    %p96 = scmp.eq.s32.totalorder %s95, 0
    %s98 = sadd.s32 %s97, 1
    %s99 = scalar_select %p96, %s97, %s98
    %p102 = pneg %p96
    %p103 = scmp.eq.s32.totalorder %s10, 1
    %p104 = por %p102, %p103
    %p105 = scmp.ne.s32.totalorder %s97, %s100
    %p106 = scmp.eq.s32.totalorder %s10, 0
    %p107 = por %p105, %p106
    %p108 = scmp.ne.s32.totalorder %s97, %s100
    %p109 = scmp.eq.s32.totalorder %s15, 1
    %p110 = por %p108, %p109
    %p111 = scmp.ne.s32.totalorder %s100, %s101
    %p112 = scmp.eq.s32.totalorder %s15, 0
    %p113 = por %p111, %p112
    %p114 = scmp.ne.s32.totalorder %s100, %s101
    %p115 = scmp.eq.s32.totalorder %s16, 1
    %p116 = por %p114, %p115
    %p118 = scmp.ne.s32.totalorder %s101, %s117
    %p119 = scmp.eq.s32.totalorder %s16, 0
    %p120 = por %p118, %p119
    %s122 = sadd.s32 %s121, 1
    %p125 = scmp.eq.s32.totalorder %s10, 1
    %p126 = scmp.ne.s32.totalorder %s121, %s123
    %p127 = scmp.eq.s32.totalorder %s10, 0
    %p128 = por %p126, %p127
    %p129 = scmp.ne.s32.totalorder %s121, %s123
    %p130 = scmp.eq.s32.totalorder %s15, 1
    %p131 = por %p129, %p130
    %p132 = scmp.ne.s32.totalorder %s123, %s124
    %p133 = scmp.eq.s32.totalorder %s15, 0
    %p134 = por %p132, %p133
    %p135 = scmp.ne.s32.totalorder %s123, %s124
    %p136 = scmp.eq.s32.totalorder %s16, 1
    %p137 = por %p135, %p136
    %p139 = scmp.ne.s32.totalorder %s124, %s138
    %p140 = scmp.eq.s32.totalorder %s16, 0
    %p141 = por %p139, %p140
    %s142 = ssub.s32 %s17, %s36
    %s143 = ssub.s32 %s18, %s32
    %s144 = sor.u32 %s142, %s143
    %p145 = scmp.eq.s32.totalorder %s144, 0
    %s147 = sadd.s32 %s146, 1
    %s148 = scalar_select %p145, %s146, %s147
    %p151 = pneg %p145
    %p152 = scmp.eq.s32.totalorder %s10, 1
    %p153 = por %p151, %p152
    %p154 = scmp.ne.s32.totalorder %s146, %s149
    %p155 = scmp.eq.s32.totalorder %s10, 0
    %p156 = por %p154, %p155
    %p157 = scmp.ne.s32.totalorder %s146, %s149
    %p158 = scmp.eq.s32.totalorder %s15, 1
    %p159 = por %p157, %p158
    %p160 = scmp.ne.s32.totalorder %s149, %s150
    %p161 = scmp.eq.s32.totalorder %s15, 0
    %p162 = por %p160, %p161
    %p163 = scmp.ne.s32.totalorder %s149, %s150
    %p164 = scmp.eq.s32.totalorder %s16, 1
    %p165 = por %p163, %p164
    %p167 = scmp.ne.s32.totalorder %s150, %s166
    %p168 = scmp.eq.s32.totalorder %s16, 0
    %p169 = por %p167, %p168
    %p170 = scmp.le.s32.totalorder 1, %s10
    %p171 = scmp.lt.s32.totalorder %s10, 3
    %p172 = pnand %p170, %p171
    %p173 = pneg %p172
    // Predicated region
    $region9: #{input_embed_forward.4} parent=5 // pred_check
      _
    $region10: #{input_embed_forward.4} parent=5 // pred_check_branch
      %175 = sbr.rel (%p172) target = $region12
    $region11: #{input_embed_forward.4} parent=5 // pred_region
      %s176 = ssub.s32 %s10, 1
      // Predicated region
      $region13: #{input_embed_forward.4} parent=11 // pred_check
        %p177 = pneg %p134
      $region14: #{input_embed_forward.4} parent=11 // pred_check_branch
        %179 = sbr.rel (%p177) target = $region16
      $region15: #{input_embed_forward.4} parent=11 // pred_region
        _
      $region16: #{input_embed_forward.4} parent=11 // pred_fallthru
        _
    $region12: #{input_embed_forward.4} parent=5 // pred_fallthru
      _
    %p180 = scmp.lt.s32.totalorder %s10, 2
    // Predicated region
    $region17: #{input_embed_forward.4} parent=5 // pred_check
      %p181 = pneg %p180
    $region18: #{input_embed_forward.4} parent=5 // pred_check_branch
      %183 = sbr.rel (%p181) target = $region20
    $region19: #{input_embed_forward.4} parent=5 // pred_region
      // Predicated region
      $region21: #{input_embed_forward.4} parent=19 // pred_check
        %p184 = pneg %p51
      $region22: #{input_embed_forward.4} parent=19 // pred_check_branch
        %186 = sbr.rel (%p184) target = $region24
      $region23: #{input_embed_forward.4} parent=19 // pred_region
        %p187 = scmp.lt.s32.totalorder %s17, 1
        %s188 = scalar_select %p187, %s17, 1
        %p189 = scmp.lt.s32.totalorder %s18, 0
        %s190 = scalar_select %p189, %s18, 0
        %s191 = sadd.s32 %s190, %s188
        %s192 = smul.addr %s191, 8
        %s193 = scalar_lea.vmem %s0, %s192
      $region24: #{input_embed_forward.4} parent=19 // pred_fallthru
        _
      // Predicated region
      $region25: #{input_embed_forward.4} parent=19 // pred_check
        %p194 = pneg %p79
      $region26: #{input_embed_forward.4} parent=19 // pred_check_branch
        %196 = sbr.rel (%p194) target = $region28
      $region27: #{input_embed_forward.4} parent=19 // pred_region
        %p197 = scmp.lt.s32.totalorder %s17, 1
        %s198 = scalar_select %p197, %s17, 1
        %p199 = scmp.lt.s32.totalorder %s18, 0
        %s200 = scalar_select %p199, %s18, 0
        %s201 = sadd.s32 %s200, %s198
        %s202 = smul.addr %s201, 8
        %s203 = scalar_lea.vmem %s1, %s202
      $region28: #{input_embed_forward.4} parent=19 // pred_fallthru
        _
      // Predicated region
      $region29: #{input_embed_forward.4} parent=19 // pred_check
        %p204 = pneg %p107
      $region30: #{input_embed_forward.4} parent=19 // pred_check_branch
        %206 = sbr.rel (%p204) target = $region32
      $region31: #{input_embed_forward.4} parent=19 // pred_region
        %s207 = smul.u32 2, %s19
        %p208 = scmp.lt.s32.totalorder %s17, 1
        %s209 = scalar_select %p208, %s17, 1
        %p210 = scmp.lt.s32.totalorder %s207, 1
        %s211 = scalar_select %p210, %s207, 1
        %s212 = smul.addr %s209, 2
        %s213 = sadd.s32 %s211, %s212
        %s214 = smul.addr %s213, 4
        %s215 = scalar_lea.vmem %s2, %s214
        %s216 = smul.u32 2, %s19
      $region32: #{input_embed_forward.4} parent=19 // pred_fallthru
        _
    $region20: #{input_embed_forward.4} parent=5 // pred_fallthru
      _
    %p217 = scmp.le.s32.totalorder 1, %s10
    %p218 = scmp.lt.s32.totalorder %s10, 3
    %p219 = pnand %p217, %p218
    %p220 = pneg %p219
    // Predicated region
    $region33: #{input_embed_forward.4} parent=5 // pred_check
      _
    $region34: #{input_embed_forward.4} parent=5 // pred_check_branch
      %222 = sbr.rel (%p219) target = $region36
    $region35: #{input_embed_forward.4} parent=5 // pred_region
      %s223 = ssub.s32 %s10, 1
      %p224 = scmp.lt.s32.totalorder %s20, 1
      %s225 = scalar_select %p224, %s20, 1
      %p226 = scmp.lt.s32.totalorder %s21, 0
      %s227 = scalar_select %p226, %s21, 0
      %s228 = sadd.s32 %s227, %s225
      %s229 = smul.addr %s228, 8
      %s230 = scalar_lea.vmem %s0, %s229
      %p231 = pneg %p57
      %p232 = pneg %p54
      %p233 = scmp.lt.s32.totalorder %s20, 1
      %s234 = scalar_select %p233, %s20, 1
      %p235 = scmp.lt.s32.totalorder %s21, 0
      %s236 = scalar_select %p235, %s21, 0
      %s237 = sadd.s32 %s236, %s234
      %s238 = smul.addr %s237, 8
      %s239 = scalar_lea.vmem %s1, %s238
      %p240 = pneg %p85
      %p241 = pneg %p82
      %s242 = smul.u32 2, %s22
      %p243 = scmp.lt.s32.totalorder %s20, 1
      %s244 = scalar_select %p243, %s20, 1
      %p245 = scmp.lt.s32.totalorder %s242, 1
      %s246 = scalar_select %p245, %s242, 1
      %s247 = smul.addr %s244, 2
      %s248 = sadd.s32 %s246, %s247
      %s249 = smul.addr %s248, 4
      %s250 = scalar_lea.vmem %s2, %s249
      %p251 = pneg %p113
      %p252 = pneg %p110
      %p253 = pneg %p134
      %p254 = pneg %p131
      %p255 = pneg %p162
      %p256 = pneg %p159
      %p257 = scmp.lt.s32.totalorder %s20, 1
      %s258 = scalar_select %p257, %s20, 1
      %p259 = scmp.lt.s32.totalorder %s21, 0
      %s260 = scalar_select %p259, %s21, 0
      %s261 = sadd.s32 %s260, %s258
      %s262 = smul.addr %s261, 8
      %s263 = scalar_lea.vmem %s4, %s262
      %p264 = scmp.lt.s32.totalorder %s20, 1
      %s265 = scalar_select %p264, %s20, 1
      %p266 = scmp.lt.s32.totalorder %s21, 0
      %s267 = scalar_select %p266, %s21, 0
      %s268 = sadd.s32 %s267, %s265
      %s269 = smul.addr %s268, 8
      %s270 = scalar_lea.vmem %s0, %s269
      %p271 = scmp.lt.s32.totalorder %s20, 1
      %s272 = scalar_select %p271, %s20, 1
      %p273 = scmp.lt.s32.totalorder %s21, 0
      %s274 = scalar_select %p273, %s21, 0
      %s275 = sadd.s32 %s274, %s272
      %s276 = smul.addr %s275, 8
      %s277 = scalar_lea.vmem %s1, %s276
      %s278 = smul.u32 2, %s22
      %p279 = scmp.lt.s32.totalorder %s20, 1
      %s280 = scalar_select %p279, %s20, 1
      %p281 = scmp.lt.s32.totalorder %s278, 1
      %s282 = scalar_select %p281, %s278, 1
      %s283 = smul.addr %s280, 2
      %s284 = sadd.s32 %s282, %s283
      %s285 = smul.addr %s284, 4
      %s286 = scalar_lea.vmem %s2, %s285
      %s287 = smul.u32 2, %s22
      %p288 = scmp.lt.s32.totalorder %s20, 1
      %s289 = scalar_select %p288, %s20, 1
      %p290 = scmp.lt.s32.totalorder %s21, 0
      %s291 = scalar_select %p290, %s21, 0
      %s292 = sadd.s32 %s291, %s289
      %s293 = smul.addr %s292, 8
      %s294 = scalar_lea.vmem %s4, %s293
      %p296 = scmp.eq.s32.totalorder %s22, 0
      // Predicated region
      $region37: #{input_embed_forward.4} parent=35 // pred_check
        %p297 = pneg %p296
      $region38: #{input_embed_forward.4} parent=35 // pred_check_branch
        %299 = sbr.rel (%p297) target = $region40
      $region39: #{input_embed_forward.4} parent=35 // pred_region
        %300 = vst [vmem:[%s294] sm:$0xff] 0.0
      $region40: #{input_embed_forward.4} parent=35 // pred_fallthru
        _
      %v301 = vld [vmem:[%s286] sm:$0xff]
      %v302 = vld [vmem:[%s3] sm:$0xf]
      %v304 = vunpack.c.l.b16 %v301
      %v305 = vunpack.c.h.b16 %v301
      %v306 = vpack.c.b16 %v304, %v304
      %v307 = vpack.c.b16 %v305, %v305
      %310 = vxpose.binary.xlu0.c.b16.start [1/16] %v307, %v306, 128
      %311 = vxpose.binary.xlu0.c.b16.cont [2/16] 0, 0, 128
      %312 = vxpose.binary.xlu0.c.b16.cont [3/16] 0, 0, 128
      %313 = vxpose.binary.xlu0.c.b16.cont [4/16] 0, 0, 128
      %314 = vxpose.binary.xlu0.c.b16.cont [5/16] 0, 0, 128
      %315 = vxpose.binary.xlu0.c.b16.cont [6/16] 0, 0, 128
      %316 = vxpose.binary.xlu0.c.b16.cont [7/16] 0, 0, 128
      %317 = vxpose.binary.xlu0.c.b16.end [8/16] 0, 0, 128
      %v318 = vpop.trf.xlu0
      %v319 = vpop.trf.xlu0
      %v320 = vpop.trf.xlu0
      %v321 = vpop.trf.xlu0
      %v322 = vpop.trf.xlu0
      %v323 = vpop.trf.xlu0
      %v324 = vpop.trf.xlu0
      %v325 = vpop.trf.xlu0
      %v326 = vpop.trf.xlu0
      %v327 = vpop.trf.xlu0
      %v328 = vpop.trf.xlu0
      %v329 = vpop.trf.xlu0
      %v330 = vpop.trf.xlu0
      %v331 = vpop.trf.xlu0
      %v332 = vpop.trf.xlu0
      %v333 = vpop.trf.xlu0
      %vm334 = vcmask 64512
      %v336 = vsel %vm334, %v318, 0
      %v339 = vsel %vm334, %v320, 0
      %v342 = vsel %vm334, %v322, 0
      %v345 = vsel %vm334, %v324, 0
      %v348 = vsel %vm334, %v326, 0
      %v351 = vsel %vm334, %v328, 0
      %v354 = vsel %vm334, %v330, 0
      %v357 = vsel %vm334, %v332, 0
      %v360 = vsel %vm334, %v319, 0
      %v363 = vsel %vm334, %v321, 0
      %v366 = vsel %vm334, %v323, 0
      %v369 = vsel %vm334, %v325, 0
      %v372 = vsel %vm334, %v327, 0
      %v375 = vsel %vm334, %v329, 0
      %v378 = vsel %vm334, %v331, 0
      %v381 = vsel %vm334, %v333, 0
      %vm383 = vcmask 1043456
      %v385 = vsel %vm383, %v302, 0
      %387 = vmatpush.bf16.msra.mxu0 0
      %388 = vmatpush.bf16.msra.mxu0 0
      %389 = vmatpush.bf16.msra.mxu0 0
      %390 = vmatpush.bf16.msra.mxu0 0
      %391 = vmatpush.bf16.msra.mxu0 0
      %392 = vmatpush.bf16.msra.mxu0 0
      %393 = vmatpush.bf16.msra.mxu0 0
      %394 = vmatpush.bf16.msra.mxu0 %v385
      %395 = vmatmul.bf16.gmra.mxu0 %v336
      %v396 = vpop.f32.mrf.mxu0
      %v397 = vadd.f32 0.0, %v396
      %v398 = vpop.f32.mrf.mxu0
      %v399 = vadd.f32 0.0, %v398
      %400 = vmatmul.bf16.gmra.mxu0 %v339
      %v401 = vpop.f32.mrf.mxu0
      %v402 = vadd.f32 0.0, %v401
      %v403 = vpop.f32.mrf.mxu0
      %v404 = vadd.f32 0.0, %v403
      %405 = vmatmul.bf16.gmra.mxu0 %v342
      %v406 = vpop.f32.mrf.mxu0
      %v407 = vadd.f32 0.0, %v406
      %v408 = vpop.f32.mrf.mxu0
      %v409 = vadd.f32 0.0, %v408
      %410 = vmatmul.bf16.gmra.mxu0 %v345
      %v411 = vpop.f32.mrf.mxu0
      %v412 = vadd.f32 0.0, %v411
      %v413 = vpop.f32.mrf.mxu0
      %v414 = vadd.f32 0.0, %v413
      %415 = vmatmul.bf16.gmra.mxu0 %v348
      %v416 = vpop.f32.mrf.mxu0
      %v417 = vadd.f32 0.0, %v416
      %v418 = vpop.f32.mrf.mxu0
      %v419 = vadd.f32 0.0, %v418
      %420 = vmatmul.bf16.gmra.mxu0 %v351
      %v421 = vpop.f32.mrf.mxu0
      %v422 = vadd.f32 0.0, %v421
      %v423 = vpop.f32.mrf.mxu0
      %v424 = vadd.f32 0.0, %v423
      %425 = vmatmul.bf16.gmra.mxu0 %v354
      %v426 = vpop.f32.mrf.mxu0
      %v427 = vadd.f32 0.0, %v426
      %v428 = vpop.f32.mrf.mxu0
      %v429 = vadd.f32 0.0, %v428
      %430 = vmatmul.bf16.gmra.mxu0 %v357
      %v431 = vpop.f32.mrf.mxu0
      %v432 = vadd.f32 0.0, %v431
      %v433 = vpop.f32.mrf.mxu0
      %v434 = vadd.f32 0.0, %v433
      %435 = vmatmul.bf16.gmra.mxu0 %v360
      %v436 = vpop.f32.mrf.mxu0
      %v437 = vadd.f32 0.0, %v436
      %v438 = vpop.f32.mrf.mxu0
      %v439 = vadd.f32 0.0, %v438
      %440 = vmatmul.bf16.gmra.mxu0 %v363
      %v441 = vpop.f32.mrf.mxu0
      %v442 = vadd.f32 0.0, %v441
      %v443 = vpop.f32.mrf.mxu0
      %v444 = vadd.f32 0.0, %v443
      %445 = vmatmul.bf16.gmra.mxu0 %v366
      %v446 = vpop.f32.mrf.mxu0
      %v447 = vadd.f32 0.0, %v446
      %v448 = vpop.f32.mrf.mxu0
      %v449 = vadd.f32 0.0, %v448
      %450 = vmatmul.bf16.gmra.mxu0 %v369
      %v451 = vpop.f32.mrf.mxu0
      %v452 = vadd.f32 0.0, %v451
      %v453 = vpop.f32.mrf.mxu0
      %v454 = vadd.f32 0.0, %v453
      %455 = vmatmul.bf16.gmra.mxu0 %v372
      %v456 = vpop.f32.mrf.mxu0
      %v457 = vadd.f32 0.0, %v456
      %v458 = vpop.f32.mrf.mxu0
      %v459 = vadd.f32 0.0, %v458
      %460 = vmatmul.bf16.gmra.mxu0 %v375
      %v461 = vpop.f32.mrf.mxu0
      %v462 = vadd.f32 0.0, %v461
      %v463 = vpop.f32.mrf.mxu0
      %v464 = vadd.f32 0.0, %v463
      %465 = vmatmul.bf16.gmra.mxu0 %v378
      %v466 = vpop.f32.mrf.mxu0
      %v467 = vadd.f32 0.0, %v466
      %v468 = vpop.f32.mrf.mxu0
      %v469 = vadd.f32 0.0, %v468
      %470 = vmatmul.bf16.gmra.mxu0 %v381
      %v471 = vpop.f32.mrf.mxu0
      %v472 = vadd.f32 0.0, %v471
      %v473 = vpop.f32.mrf.mxu0
      %v474 = vadd.f32 0.0, %v473
      %475 = vdwg.mxu0
      %v476 = vpack.c.bf16 %v399, %v397
      %v477 = vpack.c.bf16 %v404, %v402
      %v478 = vpack.c.bf16 %v409, %v407
      %v479 = vpack.c.bf16 %v414, %v412
      %v480 = vpack.c.bf16 %v419, %v417
      %v481 = vpack.c.bf16 %v424, %v422
      %v482 = vpack.c.bf16 %v429, %v427
      %v483 = vpack.c.bf16 %v434, %v432
      %v484 = vpack.c.bf16 %v439, %v437
      %v485 = vpack.c.bf16 %v444, %v442
      %v486 = vpack.c.bf16 %v449, %v447
      %v487 = vpack.c.bf16 %v454, %v452
      %v488 = vpack.c.bf16 %v459, %v457
      %v489 = vpack.c.bf16 %v464, %v462
      %v490 = vpack.c.bf16 %v469, %v467
      %v491 = vpack.c.bf16 %v474, %v472
      %s492 = smul.u32 %s22, 256
      %v493 = vlaneseq
      %v494 = vand.u32 %v493, 127
      %v495 = vadd.s32 %v494, 128
      %v496 = vstv %s492
      %v497 = vadd.s32 %v494, %v496
      %v498 = vadd.s32 %v495, %v496
      %v499 = vld [vmem:[%s270] sm:$0xff]
      %v500 = vld [vmem:[%s277] sm:$0xff]
      %501 = vset.pattern.permute.xlu0 0
      %502 = vperm.xlu0 %501, %v499
      %v503 = vpop.permute.xlu0 %502
      %vm504 = vcmp.eq.s32.totalorder %v497, %v503
      %vm505 = vcmp.eq.s32.totalorder %v498, %v503
      %507 = vset.pattern.permute.xlu0 0
      %508 = vperm.xlu0 %507, %v500
      %v509 = vpop.permute.xlu0 %508
      %v511 = vsel %vm504, %v509, 0.0
      %v512 = vsel %vm505, %v509, 0.0
      %513 = vset.pattern.permute.xlu0 1
      %514 = vperm.xlu0 %513, %v499
      %v515 = vpop.permute.xlu0 %514
      %vm516 = vcmp.eq.s32.totalorder %v497, %v515
      %vm517 = vcmp.eq.s32.totalorder %v498, %v515
      %518 = vset.pattern.permute.xlu0 1
      %519 = vperm.xlu0 %518, %v500
      %v520 = vpop.permute.xlu0 %519
      %v522 = vsel %vm516, %v520, 0.0
      %v523 = vsel %vm517, %v520, 0.0
      %v524 = vadd.f32 %v511, %v522
      %v525 = vadd.f32 %v512, %v523
      %526 = vset.pattern.permute.xlu0 2
      %527 = vperm.xlu0 %526, %v499
      %v528 = vpop.permute.xlu0 %527
      %vm529 = vcmp.eq.s32.totalorder %v497, %v528
      %vm530 = vcmp.eq.s32.totalorder %v498, %v528
      %531 = vset.pattern.permute.xlu0 2
      %532 = vperm.xlu0 %531, %v500
      %v533 = vpop.permute.xlu0 %532
      %v535 = vsel %vm529, %v533, 0.0
      %v536 = vsel %vm530, %v533, 0.0
      %v537 = vadd.f32 %v524, %v535
      %v538 = vadd.f32 %v525, %v536
      %539 = vset.pattern.permute.xlu0 3
      %540 = vperm.xlu0 %539, %v499
      %v541 = vpop.permute.xlu0 %540
      %vm542 = vcmp.eq.s32.totalorder %v497, %v541
      %vm543 = vcmp.eq.s32.totalorder %v498, %v541
      %544 = vset.pattern.permute.xlu0 3
      %545 = vperm.xlu0 %544, %v500
      %v546 = vpop.permute.xlu0 %545
      %v548 = vsel %vm542, %v546, 0.0
      %v549 = vsel %vm543, %v546, 0.0
      %v550 = vadd.f32 %v537, %v548
      %v551 = vadd.f32 %v538, %v549
      %v552 = vld [vmem:[%s294] sm:$0xff]
      %v553 = vpack.c.bf16 %v550, %v550
      %v554 = vpack.c.bf16 %v551, %v551
      %555 = vmatpush.bf16.msra.mxu0 %v483
      %556 = vmatpush.bf16.msra.mxu0 %v482
      %557 = vmatpush.bf16.msra.mxu0 %v481
      %558 = vmatpush.bf16.msra.mxu0 %v480
      %559 = vmatpush.bf16.msra.mxu0 %v479
      %560 = vmatpush.bf16.msra.mxu0 %v478
      %561 = vmatpush.bf16.msra.mxu0 %v477
      %562 = vmatpush.bf16.msra.mxu0 %v476
      %563 = vmatmul.bf16.gmra.mxu0 %v553
      %v564 = vpop.f32.mrf.mxu0
      %v565 = vadd.f32 0.0, %v564
      %v566 = vpop.f32.mrf.mxu0
      %567 = vdwg.mxu0
      %568 = vmatpush.bf16.msra.mxu0 %v491
      %569 = vmatpush.bf16.msra.mxu0 %v490
      %570 = vmatpush.bf16.msra.mxu0 %v489
      %571 = vmatpush.bf16.msra.mxu0 %v488
      %572 = vmatpush.bf16.msra.mxu0 %v487
      %573 = vmatpush.bf16.msra.mxu0 %v486
      %574 = vmatpush.bf16.msra.mxu0 %v485
      %575 = vmatpush.bf16.msra.mxu0 %v484
      %576 = vmatmul.bf16.gmra.mxu0 %v554
      %v577 = vpop.f32.mrf.mxu0
      %v578 = vadd.f32 %v565, %v577
      %v579 = vpop.f32.mrf.mxu0
      %580 = vdwg.mxu0
      %v581 = vadd.f32 %v552, %v578
      %582 = vst [vmem:[%s294] sm:$0xff] %v581
      %p583 = scmp.lt.s32.totalorder %s20, 1
      %s584 = scalar_select %p583, %s20, 1
      %p585 = scmp.lt.s32.totalorder %s21, 0
      %s586 = scalar_select %p585, %s21, 0
      %s587 = sadd.s32 %s586, %s584
      %s588 = smul.addr %s587, 8
      %s589 = scalar_lea.vmem %s4, %s588
      // Predicated region
      $region41: #{input_embed_forward.4} parent=35 // pred_check
        %p590 = pneg %p159
      $region42: #{input_embed_forward.4} parent=35 // pred_check_branch
        %592 = sbr.rel (%p590) target = $region44
      $region43: #{input_embed_forward.4} parent=35 // pred_region
        _
      $region44: #{input_embed_forward.4} parent=35 // pred_fallthru
        _
    $region36: #{input_embed_forward.4} parent=5 // pred_fallthru
      _
    %p593 = scmp.le.s32.totalorder 2, %s10
    // Predicated region
    $region45: #{input_embed_forward.4} parent=5 // pred_check
      %p594 = pneg %p593
    $region46: #{input_embed_forward.4} parent=5 // pred_check_branch
      %596 = sbr.rel (%p594) target = $region48
    $region47: #{input_embed_forward.4} parent=5 // pred_region
      %s597 = ssub.s32 %s10, 2
      // Predicated region
      $region49: #{input_embed_forward.4} parent=47 // pred_check
        %p598 = pneg %p165
      $region50: #{input_embed_forward.4} parent=47 // pred_check_branch
        %600 = sbr.rel (%p598) target = $region52
      $region51: #{input_embed_forward.4} parent=47 // pred_region
        %p601 = scmp.lt.s32.totalorder %s23, 1
        %s602 = scalar_select %p601, %s23, 1
        %p603 = scmp.lt.s32.totalorder %s24, 0
        %s604 = scalar_select %p603, %s24, 0
        %s605 = sadd.s32 %s604, %s602
        %s606 = smul.addr %s605, 8
        %s607 = scalar_lea.vmem %s4, %s606
      $region52: #{input_embed_forward.4} parent=47 // pred_fallthru
        _
    $region48: #{input_embed_forward.4} parent=5 // pred_fallthru
      _
  $region6: #{input_embed_forward.4} parent=0 // loop_footer
    %s14 = sadd.s32 1, %s10
  $region7: #{input_embed_forward.4} parent=0 // loop_footer_branch
    %9 = sbr.rel target = $region3
  $region8: #{input_embed_forward.4} parent=0 // loop_exit
    _

// kernel: input_embed_forward.7
$region0: #{input_embed_forward.7}
  #allocation0 [shape = 'u32[]', space=smem, size = 0x4, offset = 0x4, fixed_abs, tag = 'smem constant byte address 0x4 - core index']
  #allocation1 [shape = 'u32[72,128]{1,0:T(1,128)}', space=vmem, size = 0x9000, scoped, tag = 'internal scratch']
  %s0 = inlined_call_operand.vmem [shape: s32[2,8,4], index: 0, kind: input, shape index: {}]
  %s1 = inlined_call_operand.vmem [shape: f32[2,8,4], index: 1, kind: input, shape index: {}]
  %s2 = inlined_call_operand.vmem [shape: bf16[2,64,128], index: 2, kind: input, shape index: {}]
  %s3 = inlined_call_operand.vmem [shape: bf16[64,128], index: 3, kind: input, shape index: {}]
  %s4 = inlined_call_operand.vmem [shape: f32[2,8,128], index: 4, kind: input, shape index: {}, may-alias: {4,5}]
  %s5 = inlined_call_operand.vmem [shape: f32[2,8,128], index: 5, kind: output, shape index: {}, may-alias: {4,5}]
  %s6 = sld [smem:[#allocation0]]
  $region57: #{input_embed_forward.7} parent=0
    _
  %s8 = ssub.s32 1, %s6
  %s9 = scalar_select 0, %s8, %s6
  loop: start=0, step=1, limit=4
  $region2: #{input_embed_forward.7} parent=0 // loop_pre_header
    _
  $region3: #{input_embed_forward.7} parent=0 // loop_header
    %s11 = sphi 0, %s15
    %p12 = scmp.ge.s32.totalorder %s11, 4
    %s18 = sphi 0, %s37
    %s19 = sphi 0, %s33
    %s20 = sphi 0, %s29
    %s21 = sphi 0, %s18
    %s22 = sphi 0, %s19
    %s23 = sphi 0, %s20
    %s24 = sphi 0, %s21
    %s25 = sphi 0, %s22
    %s26 = sphi 0, %s23
    %s42 = sphi 0, %s44
    %s45 = sphi 0, %s42
    %s46 = sphi 0, %s45
    %s62 = sphi 0, %s46
    %s70 = sphi 0, %s72
    %s73 = sphi 0, %s70
    %s74 = sphi 0, %s73
    %s90 = sphi 0, %s74
    %s98 = sphi 0, %s100
    %s101 = sphi 0, %s98
    %s102 = sphi 0, %s101
    %s118 = sphi 0, %s102
    %s122 = sphi 0, %s122
    %s124 = sphi 0, %s122
    %s125 = sphi 0, %s124
    %s139 = sphi 0, %s125
    %s147 = sphi 0, %s149
    %s150 = sphi 0, %s147
    %s151 = sphi 0, %s150
    %s167 = sphi 0, %s151
    %s175 = sphi 0, %s177
    %s178 = sphi 0, %s175
    %s179 = sphi 0, %s178
    %s195 = sphi 0, %s179
  $region4: #{input_embed_forward.7} parent=0 // loop_header_branch
    %14 = sbr.rel (%p12) target = $region8
  $region5: #{input_embed_forward.7} parent=0 // loop_body
    %s16 = ssub.s32 %s11, 1
    %s17 = ssub.s32 %s11, 2
    %s27 = sadd.s32 1, %s20
    %p28 = scmp.ge.s32.totalorder %s27, 1
    %s29 = scalar_select %p28, 0, %s27
    %s30 = sadd.s32 1, %s19
    %s31 = scalar_select %p28, %s30, %s19
    %p32 = scmp.ge.s32.totalorder %s31, 1
    %s33 = scalar_select %p32, 0, %s31
    %s34 = sadd.s32 1, %s18
    %s35 = scalar_select %p32, %s34, %s18
    %p36 = scmp.ge.s32.totalorder %s35, 2
    %s37 = scalar_select %p36, 0, %s35
    %s38 = ssub.s32 %s18, %s37
    %s39 = ssub.s32 %s19, %s33
    %s40 = sor.u32 %s38, %s39
    %p41 = scmp.eq.s32.totalorder %s40, 0
    %s43 = sadd.s32 %s42, 1
    %s44 = scalar_select %p41, %s42, %s43
    %p47 = pneg %p41
    %p48 = scmp.eq.s32.totalorder %s11, 1
    %p49 = por %p47, %p48
    %p50 = scmp.ne.s32.totalorder %s42, %s45
    %p51 = scmp.eq.s32.totalorder %s11, 0
    %p52 = por %p50, %p51
    %p53 = scmp.ne.s32.totalorder %s42, %s45
    %p54 = scmp.eq.s32.totalorder %s16, 1
    %p55 = por %p53, %p54
    %p56 = scmp.ne.s32.totalorder %s45, %s46
    %p57 = scmp.eq.s32.totalorder %s16, 0
    %p58 = por %p56, %p57
    %p59 = scmp.ne.s32.totalorder %s45, %s46
    %p60 = scmp.eq.s32.totalorder %s17, 1
    %p61 = por %p59, %p60
    %p63 = scmp.ne.s32.totalorder %s46, %s62
    %p64 = scmp.eq.s32.totalorder %s17, 0
    %p65 = por %p63, %p64
    %s66 = ssub.s32 %s18, %s37
    %s67 = ssub.s32 %s19, %s33
    %s68 = sor.u32 %s66, %s67
    %p69 = scmp.eq.s32.totalorder %s68, 0
    %s71 = sadd.s32 %s70, 1
    %s72 = scalar_select %p69, %s70, %s71
    %p75 = pneg %p69
    %p76 = scmp.eq.s32.totalorder %s11, 1
    %p77 = por %p75, %p76
    %p78 = scmp.ne.s32.totalorder %s70, %s73
    %p79 = scmp.eq.s32.totalorder %s11, 0
    %p80 = por %p78, %p79
    %p81 = scmp.ne.s32.totalorder %s70, %s73
    %p82 = scmp.eq.s32.totalorder %s16, 1
    %p83 = por %p81, %p82
    %p84 = scmp.ne.s32.totalorder %s73, %s74
    %p85 = scmp.eq.s32.totalorder %s16, 0
    %p86 = por %p84, %p85
    %p87 = scmp.ne.s32.totalorder %s73, %s74
    %p88 = scmp.eq.s32.totalorder %s17, 1
    %p89 = por %p87, %p88
    %p91 = scmp.ne.s32.totalorder %s74, %s90
    %p92 = scmp.eq.s32.totalorder %s17, 0
    %p93 = por %p91, %p92
    %s94 = ssub.s32 %s18, %s37
    %s95 = ssub.s32 %s20, %s29
    %s96 = sor.u32 %s94, %s95
    %p97 = scmp.eq.s32.totalorder %s96, 0
    %s99 = sadd.s32 %s98, 1
    %s100 = scalar_select %p97, %s98, %s99
    %p103 = pneg %p97
    %p104 = scmp.eq.s32.totalorder %s11, 1
    %p105 = por %p103, %p104
    %p106 = scmp.ne.s32.totalorder %s98, %s101
    %p107 = scmp.eq.s32.totalorder %s11, 0
    %p108 = por %p106, %p107
    %p109 = scmp.ne.s32.totalorder %s98, %s101
    %p110 = scmp.eq.s32.totalorder %s16, 1
    %p111 = por %p109, %p110
    %p112 = scmp.ne.s32.totalorder %s101, %s102
    %p113 = scmp.eq.s32.totalorder %s16, 0
    %p114 = por %p112, %p113
    %p115 = scmp.ne.s32.totalorder %s101, %s102
    %p116 = scmp.eq.s32.totalorder %s17, 1
    %p117 = por %p115, %p116
    %p119 = scmp.ne.s32.totalorder %s102, %s118
    %p120 = scmp.eq.s32.totalorder %s17, 0
    %p121 = por %p119, %p120
    %s123 = sadd.s32 %s122, 1
    %p126 = scmp.eq.s32.totalorder %s11, 1
    %p127 = scmp.ne.s32.totalorder %s122, %s124
    %p128 = scmp.eq.s32.totalorder %s11, 0
    %p129 = por %p127, %p128
    %p130 = scmp.ne.s32.totalorder %s122, %s124
    %p131 = scmp.eq.s32.totalorder %s16, 1
    %p132 = por %p130, %p131
    %p133 = scmp.ne.s32.totalorder %s124, %s125
    %p134 = scmp.eq.s32.totalorder %s16, 0
    %p135 = por %p133, %p134
    %p136 = scmp.ne.s32.totalorder %s124, %s125
    %p137 = scmp.eq.s32.totalorder %s17, 1
    %p138 = por %p136, %p137
    %p140 = scmp.ne.s32.totalorder %s125, %s139
    %p141 = scmp.eq.s32.totalorder %s17, 0
    %p142 = por %p140, %p141
    %s143 = ssub.s32 %s18, %s37
    %s144 = ssub.s32 %s19, %s33
    %s145 = sor.u32 %s143, %s144
    %p146 = scmp.eq.s32.totalorder %s145, 0
    %s148 = sadd.s32 %s147, 1
    %s149 = scalar_select %p146, %s147, %s148
    %p152 = pneg %p146
    %p153 = scmp.eq.s32.totalorder %s11, 1
    %p154 = por %p152, %p153
    %p155 = scmp.ne.s32.totalorder %s147, %s150
    %p156 = scmp.eq.s32.totalorder %s11, 0
    %p157 = por %p155, %p156
    %p158 = scmp.ne.s32.totalorder %s147, %s150
    %p159 = scmp.eq.s32.totalorder %s16, 1
    %p160 = por %p158, %p159
    %p161 = scmp.ne.s32.totalorder %s150, %s151
    %p162 = scmp.eq.s32.totalorder %s16, 0
    %p163 = por %p161, %p162
    %p164 = scmp.ne.s32.totalorder %s150, %s151
    %p165 = scmp.eq.s32.totalorder %s17, 1
    %p166 = por %p164, %p165
    %p168 = scmp.ne.s32.totalorder %s151, %s167
    %p169 = scmp.eq.s32.totalorder %s17, 0
    %p170 = por %p168, %p169
    %s171 = ssub.s32 %s18, %s37
    %s172 = ssub.s32 %s19, %s33
    %s173 = sor.u32 %s171, %s172
    %p174 = scmp.eq.s32.totalorder %s173, 0
    %s176 = sadd.s32 %s175, 1
    %s177 = scalar_select %p174, %s175, %s176
    %p180 = pneg %p174
    %p181 = scmp.eq.s32.totalorder %s11, 1
    %p182 = por %p180, %p181
    %p183 = scmp.ne.s32.totalorder %s175, %s178
    %p184 = scmp.eq.s32.totalorder %s11, 0
    %p185 = por %p183, %p184
    %p186 = scmp.ne.s32.totalorder %s175, %s178
    %p187 = scmp.eq.s32.totalorder %s16, 1
    %p188 = por %p186, %p187
    %p189 = scmp.ne.s32.totalorder %s178, %s179
    %p190 = scmp.eq.s32.totalorder %s16, 0
    %p191 = por %p189, %p190
    %p192 = scmp.ne.s32.totalorder %s178, %s179
    %p193 = scmp.eq.s32.totalorder %s17, 1
    %p194 = por %p192, %p193
    %p196 = scmp.ne.s32.totalorder %s179, %s195
    %p197 = scmp.eq.s32.totalorder %s17, 0
    %p198 = por %p196, %p197
    %p199 = scmp.le.s32.totalorder 1, %s11
    %p200 = scmp.lt.s32.totalorder %s11, 3
    %p201 = pnand %p199, %p200
    %p202 = pneg %p201
    // Predicated region
    $region9: #{input_embed_forward.7} parent=5 // pred_check
      _
    $region10: #{input_embed_forward.7} parent=5 // pred_check_branch
      %204 = sbr.rel (%p201) target = $region12
    $region11: #{input_embed_forward.7} parent=5 // pred_region
      %s205 = ssub.s32 %s11, 1
      // Predicated region
      $region13: #{input_embed_forward.7} parent=11 // pred_check
        %p206 = pneg %p135
      $region14: #{input_embed_forward.7} parent=11 // pred_check_branch
        %208 = sbr.rel (%p206) target = $region16
      $region15: #{input_embed_forward.7} parent=11 // pred_region
        _
      $region16: #{input_embed_forward.7} parent=11 // pred_fallthru
        _
    $region12: #{input_embed_forward.7} parent=5 // pred_fallthru
      _
    %p209 = scmp.lt.s32.totalorder %s11, 2
    // Predicated region
    $region17: #{input_embed_forward.7} parent=5 // pred_check
      %p210 = pneg %p209
    $region18: #{input_embed_forward.7} parent=5 // pred_check_branch
      %212 = sbr.rel (%p210) target = $region20
    $region19: #{input_embed_forward.7} parent=5 // pred_region
      // Predicated region
      $region21: #{input_embed_forward.7} parent=19 // pred_check
        %p213 = pneg %p52
      $region22: #{input_embed_forward.7} parent=19 // pred_check_branch
        %215 = sbr.rel (%p213) target = $region24
      $region23: #{input_embed_forward.7} parent=19 // pred_region
        %p216 = scmp.lt.s32.totalorder %s18, 1
        %s217 = scalar_select %p216, %s18, 1
        %p218 = scmp.lt.s32.totalorder %s19, 0
        %s219 = scalar_select %p218, %s19, 0
        %s220 = sadd.s32 %s219, %s217
        %s221 = smul.addr %s220, 8
        %s222 = scalar_lea.vmem %s0, %s221
      $region24: #{input_embed_forward.7} parent=19 // pred_fallthru
        _
      // Predicated region
      $region25: #{input_embed_forward.7} parent=19 // pred_check
        %p223 = pneg %p80
      $region26: #{input_embed_forward.7} parent=19 // pred_check_branch
        %225 = sbr.rel (%p223) target = $region28
      $region27: #{input_embed_forward.7} parent=19 // pred_region
        %p226 = scmp.lt.s32.totalorder %s18, 1
        %s227 = scalar_select %p226, %s18, 1
        %p228 = scmp.lt.s32.totalorder %s19, 0
        %s229 = scalar_select %p228, %s19, 0
        %s230 = sadd.s32 %s229, %s227
        %s231 = smul.addr %s230, 8
        %s232 = scalar_lea.vmem %s1, %s231
      $region28: #{input_embed_forward.7} parent=19 // pred_fallthru
        _
      // Predicated region
      $region29: #{input_embed_forward.7} parent=19 // pred_check
        %p233 = pneg %p108
      $region30: #{input_embed_forward.7} parent=19 // pred_check_branch
        %235 = sbr.rel (%p233) target = $region32
      $region31: #{input_embed_forward.7} parent=19 // pred_region
        %p236 = scmp.lt.s32.totalorder %s18, 1
        %s237 = scalar_select %p236, %s18, 1
        %p238 = scmp.lt.s32.totalorder %s20, 0
        %s239 = scalar_select %p238, %s20, 0
        %s240 = smul.addr %s237, 8
        %s241 = sadd.s32 %s239, %s240
        %s242 = smul.addr %s241, 4
        %s243 = scalar_lea.vmem %s2, %s242
      $region32: #{input_embed_forward.7} parent=19 // pred_fallthru
        _
      // Predicated region
      $region33: #{input_embed_forward.7} parent=19 // pred_check
        %p244 = pneg %p157
      $region34: #{input_embed_forward.7} parent=19 // pred_check_branch
        %246 = sbr.rel (%p244) target = $region36
      $region35: #{input_embed_forward.7} parent=19 // pred_region
        %p247 = scmp.lt.s32.totalorder %s18, 1
        %s248 = scalar_select %p247, %s18, 1
        %p249 = scmp.lt.s32.totalorder %s19, 0
        %s250 = scalar_select %p249, %s19, 0
        %s251 = sadd.s32 %s250, %s248
        %s252 = smul.addr %s251, 8
        %s253 = scalar_lea.vmem %s4, %s252
      $region36: #{input_embed_forward.7} parent=19 // pred_fallthru
        _
    $region20: #{input_embed_forward.7} parent=5 // pred_fallthru
      _
    %p254 = scmp.le.s32.totalorder 1, %s11
    %p255 = scmp.lt.s32.totalorder %s11, 3
    %p256 = pnand %p254, %p255
    %p257 = pneg %p256
    // Predicated region
    $region37: #{input_embed_forward.7} parent=5 // pred_check
      _
    $region38: #{input_embed_forward.7} parent=5 // pred_check_branch
      %259 = sbr.rel (%p256) target = $region40
    $region39: #{input_embed_forward.7} parent=5 // pred_region
      %s260 = ssub.s32 %s11, 1
      %p261 = scmp.lt.s32.totalorder %s21, 1
      %s262 = scalar_select %p261, %s21, 1
      %p263 = scmp.lt.s32.totalorder %s22, 0
      %s264 = scalar_select %p263, %s22, 0
      %s265 = sadd.s32 %s264, %s262
      %s266 = smul.addr %s265, 8
      %s267 = scalar_lea.vmem %s0, %s266
      %p268 = pneg %p58
      %p269 = pneg %p55
      %p270 = scmp.lt.s32.totalorder %s21, 1
      %s271 = scalar_select %p270, %s21, 1
      %p272 = scmp.lt.s32.totalorder %s22, 0
      %s273 = scalar_select %p272, %s22, 0
      %s274 = sadd.s32 %s273, %s271
      %s275 = smul.addr %s274, 8
      %s276 = scalar_lea.vmem %s1, %s275
      %p277 = pneg %p86
      %p278 = pneg %p83
      %p279 = scmp.lt.s32.totalorder %s21, 1
      %s280 = scalar_select %p279, %s21, 1
      %p281 = scmp.lt.s32.totalorder %s23, 0
      %s282 = scalar_select %p281, %s23, 0
      %s283 = smul.addr %s280, 8
      %s284 = sadd.s32 %s282, %s283
      %s285 = smul.addr %s284, 4
      %s286 = scalar_lea.vmem %s2, %s285
      %p287 = pneg %p114
      %p288 = pneg %p111
      %p289 = pneg %p135
      %p290 = pneg %p132
      %p291 = scmp.lt.s32.totalorder %s21, 1
      %s292 = scalar_select %p291, %s21, 1
      %p293 = scmp.lt.s32.totalorder %s22, 0
      %s294 = scalar_select %p293, %s22, 0
      %s295 = sadd.s32 %s294, %s292
      %s296 = smul.addr %s295, 8
      %s297 = scalar_lea.vmem %s4, %s296
      %p298 = pneg %p163
      %p299 = pneg %p160
      %p300 = pneg %p191
      %p301 = pneg %p188
      %p302 = scmp.lt.s32.totalorder %s21, 1
      %s303 = scalar_select %p302, %s21, 1
      %p304 = scmp.lt.s32.totalorder %s22, 0
      %s305 = scalar_select %p304, %s22, 0
      %s306 = sadd.s32 %s305, %s303
      %s307 = smul.addr %s306, 8
      %s308 = scalar_lea.vmem %s5, %s307
      %p309 = scmp.lt.s32.totalorder %s21, 1
      %s310 = scalar_select %p309, %s21, 1
      %p311 = scmp.lt.s32.totalorder %s22, 0
      %s312 = scalar_select %p311, %s22, 0
      %s313 = sadd.s32 %s312, %s310
      %s314 = smul.addr %s313, 8
      %s315 = scalar_lea.vmem %s0, %s314
      %p316 = scmp.lt.s32.totalorder %s21, 1
      %s317 = scalar_select %p316, %s21, 1
      %p318 = scmp.lt.s32.totalorder %s22, 0
      %s319 = scalar_select %p318, %s22, 0
      %s320 = sadd.s32 %s319, %s317
      %s321 = smul.addr %s320, 8
      %s322 = scalar_lea.vmem %s1, %s321
      %p323 = scmp.lt.s32.totalorder %s21, 1
      %s324 = scalar_select %p323, %s21, 1
      %p325 = scmp.lt.s32.totalorder %s23, 0
      %s326 = scalar_select %p325, %s23, 0
      %s327 = smul.addr %s324, 8
      %s328 = sadd.s32 %s326, %s327
      %s329 = smul.addr %s328, 4
      %s330 = scalar_lea.vmem %s2, %s329
      %p331 = scmp.lt.s32.totalorder %s21, 1
      %s332 = scalar_select %p331, %s21, 1
      %p333 = scmp.lt.s32.totalorder %s22, 0
      %s334 = scalar_select %p333, %s22, 0
      %s335 = sadd.s32 %s334, %s332
      %s336 = smul.addr %s335, 8
      %s337 = scalar_lea.vmem %s4, %s336
      %p338 = scmp.lt.s32.totalorder %s21, 1
      %s339 = scalar_select %p338, %s21, 1
      %p340 = scmp.lt.s32.totalorder %s22, 0
      %s341 = scalar_select %p340, %s22, 0
      %s342 = sadd.s32 %s341, %s339
      %s343 = smul.addr %s342, 8
      %s344 = scalar_lea.vmem %s5, %s343
      %p346 = scmp.eq.s32.totalorder %s23, 0
      // Predicated region
      $region41: #{input_embed_forward.7} parent=39 // pred_check
        %p347 = pneg %p346
      $region42: #{input_embed_forward.7} parent=39 // pred_check_branch
        %349 = sbr.rel (%p347) target = $region44
      $region43: #{input_embed_forward.7} parent=39 // pred_region
        %v350 = vld [vmem:[%s337] sm:$0xff]
        %351 = vst [vmem:[%s344] sm:$0xff] %v350
      $region44: #{input_embed_forward.7} parent=39 // pred_fallthru
        _
      %v352 = vld [vmem:[%s330] sm:$0xf]
      %v353 = vld [vmem:[%s330 + $0x4] sm:$0xf]
      %v354 = vld [vmem:[%s330 + $0x8] sm:$0xf]
      %v355 = vld [vmem:[%s330 + $0xc] sm:$0xf]
      %v356 = vld [vmem:[%s330 + $0x10] sm:$0xf]
      %v357 = vld [vmem:[%s330 + $0x14] sm:$0xf]
      %v358 = vld [vmem:[%s330 + $0x18] sm:$0xf]
      %v359 = vld [vmem:[%s330 + $0x1c] sm:$0xf]
      %v360 = vld [vmem:[%s3] sm:$0xf]
      %v361 = vld [vmem:[%s3 + $0x4] sm:$0xf]
      %v362 = vld [vmem:[%s3 + $0x8] sm:$0xf]
      %v363 = vld [vmem:[%s3 + $0xc] sm:$0xf]
      %v364 = vld [vmem:[%s3 + $0x10] sm:$0xf]
      %v365 = vld [vmem:[%s3 + $0x14] sm:$0xf]
      %v366 = vld [vmem:[%s3 + $0x18] sm:$0xf]
      %v367 = vld [vmem:[%s3 + $0x1c] sm:$0xf]
      %v376 = vunpack.c.l.b16 %v352
      %v377 = vunpack.c.l.b16 %v353
      %v378 = vunpack.c.l.b16 %v354
      %v379 = vunpack.c.l.b16 %v355
      %v380 = vunpack.c.l.b16 %v356
      %v381 = vunpack.c.l.b16 %v357
      %v382 = vunpack.c.l.b16 %v358
      %v383 = vunpack.c.l.b16 %v359
      %v384 = vpack.c.b16 %v377, %v376
      %v385 = vpack.c.b16 %v379, %v378
      %v386 = vpack.c.b16 %v381, %v380
      %v387 = vpack.c.b16 %v383, %v382
      %392 = vxpose.xlu0.c.b16.start [1/8] %v384, 128
      %393 = vxpose.xlu0.c.b16.cont [2/8] %v385, 128
      %394 = vxpose.xlu0.c.b16.cont [3/8] %v386, 128
      %395 = vxpose.xlu0.c.b16.cont [4/8] %v387, 128
      %396 = vxpose.xlu0.c.b16.cont [5/8] 0, 128
      %397 = vxpose.xlu0.c.b16.cont [6/8] 0, 128
      %398 = vxpose.xlu0.c.b16.cont [7/8] 0, 128
      %399 = vxpose.xlu0.c.b16.end [8/8] 0, 128
      %v400 = vpop.trf.xlu0
      %v401 = vpop.trf.xlu0
      %v402 = vpop.trf.xlu0
      %v403 = vpop.trf.xlu0
      %v404 = vpop.trf.xlu0
      %v405 = vpop.trf.xlu0
      %v406 = vpop.trf.xlu0
      %v407 = vpop.trf.xlu0
      %v416 = vunpack.c.l.b16 %v360
      %v417 = vunpack.c.l.b16 %v361
      %v418 = vunpack.c.l.b16 %v362
      %v419 = vunpack.c.l.b16 %v363
      %v420 = vunpack.c.l.b16 %v364
      %v421 = vunpack.c.l.b16 %v365
      %v422 = vunpack.c.l.b16 %v366
      %v423 = vunpack.c.l.b16 %v367
      %v424 = vpack.c.b16 %v417, %v416
      %v425 = vpack.c.b16 %v419, %v418
      %v426 = vpack.c.b16 %v421, %v420
      %v427 = vpack.c.b16 %v423, %v422
      %vm432 = vcmask 523264
      %v434 = vsel %vm432, %v400, 0
      %v437 = vsel %vm432, %v401, 0
      %v440 = vsel %vm432, %v402, 0
      %v443 = vsel %vm432, %v403, 0
      %v446 = vsel %vm432, %v404, 0
      %v449 = vsel %vm432, %v405, 0
      %v452 = vsel %vm432, %v406, 0
      %v455 = vsel %vm432, %v407, 0
      %457 = vmatpush.bf16.msra.mxu0 0
      %458 = vmatpush.bf16.msra.mxu0 0
      %459 = vmatpush.bf16.msra.mxu0 0
      %460 = vmatpush.bf16.msra.mxu0 0
      %461 = vmatpush.bf16.msra.mxu0 %v427
      %462 = vmatpush.bf16.msra.mxu0 %v426
      %463 = vmatpush.bf16.msra.mxu0 %v425
      %464 = vmatpush.bf16.msra.mxu0 %v424
      %465 = vmatmul.bf16.gmra.mxu0 %v434
      %v466 = vpop.f32.mrf.mxu0
      %v467 = vadd.f32 0.0, %v466
      %v468 = vpop.f32.mrf.mxu0
      %v469 = vadd.f32 0.0, %v468
      %470 = vmatmul.bf16.gmra.mxu0 %v437
      %v471 = vpop.f32.mrf.mxu0
      %v472 = vadd.f32 0.0, %v471
      %v473 = vpop.f32.mrf.mxu0
      %v474 = vadd.f32 0.0, %v473
      %475 = vmatmul.bf16.gmra.mxu0 %v440
      %v476 = vpop.f32.mrf.mxu0
      %v477 = vadd.f32 0.0, %v476
      %v478 = vpop.f32.mrf.mxu0
      %v479 = vadd.f32 0.0, %v478
      %480 = vmatmul.bf16.gmra.mxu0 %v443
      %v481 = vpop.f32.mrf.mxu0
      %v482 = vadd.f32 0.0, %v481
      %v483 = vpop.f32.mrf.mxu0
      %v484 = vadd.f32 0.0, %v483
      %485 = vmatmul.bf16.gmra.mxu0 %v446
      %v486 = vpop.f32.mrf.mxu0
      %v487 = vadd.f32 0.0, %v486
      %v488 = vpop.f32.mrf.mxu0
      %v489 = vadd.f32 0.0, %v488
      %490 = vmatmul.bf16.gmra.mxu0 %v449
      %v491 = vpop.f32.mrf.mxu0
      %v492 = vadd.f32 0.0, %v491
      %v493 = vpop.f32.mrf.mxu0
      %v494 = vadd.f32 0.0, %v493
      %495 = vmatmul.bf16.gmra.mxu0 %v452
      %v496 = vpop.f32.mrf.mxu0
      %v497 = vadd.f32 0.0, %v496
      %v498 = vpop.f32.mrf.mxu0
      %v499 = vadd.f32 0.0, %v498
      %500 = vmatmul.bf16.gmra.mxu0 %v455
      %v501 = vpop.f32.mrf.mxu0
      %v502 = vadd.f32 0.0, %v501
      %v503 = vpop.f32.mrf.mxu0
      %v504 = vadd.f32 0.0, %v503
      %505 = vdwg.mxu0
      %v506 = vpack.c.bf16 %v469, %v467
      %v507 = vpack.c.bf16 %v474, %v472
      %v508 = vpack.c.bf16 %v479, %v477
      %v509 = vpack.c.bf16 %v484, %v482
      %v510 = vpack.c.bf16 %v489, %v487
      %v511 = vpack.c.bf16 %v494, %v492
      %v512 = vpack.c.bf16 %v499, %v497
      %v513 = vpack.c.bf16 %v504, %v502
      %s514 = smul.u32 %s23, 128
      %v515 = vlaneseq
      %v516 = vand.u32 %v515, 127
      %v517 = vstv %s514
      %v518 = vadd.s32 %v516, %v517
      %v519 = vld [vmem:[%s315] sm:$0xff]
      %v520 = vld [vmem:[%s322] sm:$0xff]
      %521 = vset.pattern.permute.xlu0 0
      %522 = vperm.xlu0 %521, %v519
      %v523 = vpop.permute.xlu0 %522
      %vm524 = vcmp.eq.s32.totalorder %v518, %v523
      %526 = vset.pattern.permute.xlu0 0
      %527 = vperm.xlu0 %526, %v520
      %v528 = vpop.permute.xlu0 %527
      %v530 = vsel %vm524, %v528, 0.0
      %531 = vset.pattern.permute.xlu0 1
      %532 = vperm.xlu0 %531, %v519
      %v533 = vpop.permute.xlu0 %532
      %vm534 = vcmp.eq.s32.totalorder %v518, %v533
      %535 = vset.pattern.permute.xlu0 1
      %536 = vperm.xlu0 %535, %v520
      %v537 = vpop.permute.xlu0 %536
      %v539 = vsel %vm534, %v537, 0.0
      %v540 = vadd.f32 %v530, %v539
      %541 = vset.pattern.permute.xlu0 2
      %542 = vperm.xlu0 %541, %v519
      %v543 = vpop.permute.xlu0 %542
      %vm544 = vcmp.eq.s32.totalorder %v518, %v543
      %545 = vset.pattern.permute.xlu0 2
      %546 = vperm.xlu0 %545, %v520
      %v547 = vpop.permute.xlu0 %546
      %v549 = vsel %vm544, %v547, 0.0
      %v550 = vadd.f32 %v540, %v549
      %551 = vset.pattern.permute.xlu0 3
      %552 = vperm.xlu0 %551, %v519
      %v553 = vpop.permute.xlu0 %552
      %vm554 = vcmp.eq.s32.totalorder %v518, %v553
      %555 = vset.pattern.permute.xlu0 3
      %556 = vperm.xlu0 %555, %v520
      %v557 = vpop.permute.xlu0 %556
      %v559 = vsel %vm554, %v557, 0.0
      %v560 = vadd.f32 %v550, %v559
      %v561 = vld [vmem:[%s344] sm:$0xff]
      %v562 = vpack.c.bf16 %v560, %v560
      %563 = vmatpush.bf16.msra.mxu0 %v513
      %564 = vmatpush.bf16.msra.mxu0 %v512
      %565 = vmatpush.bf16.msra.mxu0 %v511
      %566 = vmatpush.bf16.msra.mxu0 %v510
      %567 = vmatpush.bf16.msra.mxu0 %v509
      %568 = vmatpush.bf16.msra.mxu0 %v508
      %569 = vmatpush.bf16.msra.mxu0 %v507
      %570 = vmatpush.bf16.msra.mxu0 %v506
      %571 = vmatmul.bf16.gmra.mxu0 %v562
      %v572 = vpop.f32.mrf.mxu0
      %v573 = vadd.f32 0.0, %v572
      %v574 = vpop.f32.mrf.mxu0
      %575 = vdwg.mxu0
      %v576 = vadd.f32 %v561, %v573
      %577 = vst [vmem:[%s344] sm:$0xff] %v576
      %p578 = scmp.lt.s32.totalorder %s21, 1
      %s579 = scalar_select %p578, %s21, 1
      %p580 = scmp.lt.s32.totalorder %s22, 0
      %s581 = scalar_select %p580, %s22, 0
      %s582 = sadd.s32 %s581, %s579
      %s583 = smul.addr %s582, 8
      %s584 = scalar_lea.vmem %s5, %s583
      // Predicated region
      $region45: #{input_embed_forward.7} parent=39 // pred_check
        %p585 = pneg %p188
      $region46: #{input_embed_forward.7} parent=39 // pred_check_branch
        %587 = sbr.rel (%p585) target = $region48
      $region47: #{input_embed_forward.7} parent=39 // pred_region
        _
      $region48: #{input_embed_forward.7} parent=39 // pred_fallthru
        _
    $region40: #{input_embed_forward.7} parent=5 // pred_fallthru
      _
    %p588 = scmp.le.s32.totalorder 2, %s11
    // Predicated region
    $region49: #{input_embed_forward.7} parent=5 // pred_check
      %p589 = pneg %p588
    $region50: #{input_embed_forward.7} parent=5 // pred_check_branch
      %591 = sbr.rel (%p589) target = $region52
    $region51: #{input_embed_forward.7} parent=5 // pred_region
      %s592 = ssub.s32 %s11, 2
      // Predicated region
      $region53: #{input_embed_forward.7} parent=51 // pred_check
        %p593 = pneg %p194
      $region54: #{input_embed_forward.7} parent=51 // pred_check_branch
        %595 = sbr.rel (%p593) target = $region56
      $region55: #{input_embed_forward.7} parent=51 // pred_region
        %p596 = scmp.lt.s32.totalorder %s24, 1
        %s597 = scalar_select %p596, %s24, 1
        %p598 = scmp.lt.s32.totalorder %s25, 0
        %s599 = scalar_select %p598, %s25, 0
        %s600 = sadd.s32 %s599, %s597
        %s601 = smul.addr %s600, 8
        %s602 = scalar_lea.vmem %s5, %s601
      $region56: #{input_embed_forward.7} parent=51 // pred_fallthru
        _
    $region52: #{input_embed_forward.7} parent=5 // pred_fallthru
      _
  $region6: #{input_embed_forward.7} parent=0 // loop_footer
    %s15 = sadd.s32 1, %s11
  $region7: #{input_embed_forward.7} parent=0 // loop_footer_branch
    %10 = sbr.rel target = $region3
  $region8: #{input_embed_forward.7} parent=0 // loop_exit
    _

// kernel: input_embed_forward.6
$region0: #{input_embed_forward.6}
  #allocation0 [shape = 'u32[]', space=smem, size = 0x4, offset = 0x4, fixed_abs, tag = 'smem constant byte address 0x4 - core index']
  #allocation1 [shape = 'u32[72,128]{1,0:T(1,128)}', space=vmem, size = 0x9000, scoped, tag = 'internal scratch']
  %s0 = inlined_call_operand.vmem [shape: s32[2,8,4], index: 0, kind: input, shape index: {}]
  %s1 = inlined_call_operand.vmem [shape: f32[2,8,4], index: 1, kind: input, shape index: {}]
  %s2 = inlined_call_operand.vmem [shape: bf16[2,32,128], index: 2, kind: input, shape index: {}]
  %s3 = inlined_call_operand.vmem [shape: bf16[32,128], index: 3, kind: input, shape index: {}]
  %s4 = inlined_call_operand.vmem [shape: f32[2,8,128], index: 4, kind: input, shape index: {}, may-alias: {4,5}]
  %s5 = inlined_call_operand.vmem [shape: f32[2,8,128], index: 5, kind: output, shape index: {}, may-alias: {4,5}]
  %s6 = sld [smem:[#allocation0]]
  $region57: #{input_embed_forward.6} parent=0
    _
  %s8 = ssub.s32 1, %s6
  %s9 = scalar_select 0, %s8, %s6
  loop: start=0, step=1, limit=4
  $region2: #{input_embed_forward.6} parent=0 // loop_pre_header
    _
  $region3: #{input_embed_forward.6} parent=0 // loop_header
    %s11 = sphi 0, %s15
    %p12 = scmp.ge.s32.totalorder %s11, 4
    %s18 = sphi 0, %s37
    %s19 = sphi 0, %s33
    %s20 = sphi 0, %s29
    %s21 = sphi 0, %s18
    %s22 = sphi 0, %s19
    %s23 = sphi 0, %s20
    %s24 = sphi 0, %s21
    %s25 = sphi 0, %s22
    %s26 = sphi 0, %s23
    %s42 = sphi 0, %s44
    %s45 = sphi 0, %s42
    %s46 = sphi 0, %s45
    %s62 = sphi 0, %s46
    %s70 = sphi 0, %s72
    %s73 = sphi 0, %s70
    %s74 = sphi 0, %s73
    %s90 = sphi 0, %s74
    %s98 = sphi 0, %s100
    %s101 = sphi 0, %s98
    %s102 = sphi 0, %s101
    %s118 = sphi 0, %s102
    %s122 = sphi 0, %s122
    %s124 = sphi 0, %s122
    %s125 = sphi 0, %s124
    %s139 = sphi 0, %s125
    %s147 = sphi 0, %s149
    %s150 = sphi 0, %s147
    %s151 = sphi 0, %s150
    %s167 = sphi 0, %s151
    %s175 = sphi 0, %s177
    %s178 = sphi 0, %s175
    %s179 = sphi 0, %s178
    %s195 = sphi 0, %s179
  $region4: #{input_embed_forward.6} parent=0 // loop_header_branch
    %14 = sbr.rel (%p12) target = $region8
  $region5: #{input_embed_forward.6} parent=0 // loop_body
    %s16 = ssub.s32 %s11, 1
    %s17 = ssub.s32 %s11, 2
    %s27 = sadd.s32 1, %s20
    %p28 = scmp.ge.s32.totalorder %s27, 1
    %s29 = scalar_select %p28, 0, %s27
    %s30 = sadd.s32 1, %s19
    %s31 = scalar_select %p28, %s30, %s19
    %p32 = scmp.ge.s32.totalorder %s31, 1
    %s33 = scalar_select %p32, 0, %s31
    %s34 = sadd.s32 1, %s18
    %s35 = scalar_select %p32, %s34, %s18
    %p36 = scmp.ge.s32.totalorder %s35, 2
    %s37 = scalar_select %p36, 0, %s35
    %s38 = ssub.s32 %s18, %s37
    %s39 = ssub.s32 %s19, %s33
    %s40 = sor.u32 %s38, %s39
    %p41 = scmp.eq.s32.totalorder %s40, 0
    %s43 = sadd.s32 %s42, 1
    %s44 = scalar_select %p41, %s42, %s43
    %p47 = pneg %p41
    %p48 = scmp.eq.s32.totalorder %s11, 1
    %p49 = por %p47, %p48
    %p50 = scmp.ne.s32.totalorder %s42, %s45
    %p51 = scmp.eq.s32.totalorder %s11, 0
    %p52 = por %p50, %p51
    %p53 = scmp.ne.s32.totalorder %s42, %s45
    %p54 = scmp.eq.s32.totalorder %s16, 1
    %p55 = por %p53, %p54
    %p56 = scmp.ne.s32.totalorder %s45, %s46
    %p57 = scmp.eq.s32.totalorder %s16, 0
    %p58 = por %p56, %p57
    %p59 = scmp.ne.s32.totalorder %s45, %s46
    %p60 = scmp.eq.s32.totalorder %s17, 1
    %p61 = por %p59, %p60
    %p63 = scmp.ne.s32.totalorder %s46, %s62
    %p64 = scmp.eq.s32.totalorder %s17, 0
    %p65 = por %p63, %p64
    %s66 = ssub.s32 %s18, %s37
    %s67 = ssub.s32 %s19, %s33
    %s68 = sor.u32 %s66, %s67
    %p69 = scmp.eq.s32.totalorder %s68, 0
    %s71 = sadd.s32 %s70, 1
    %s72 = scalar_select %p69, %s70, %s71
    %p75 = pneg %p69
    %p76 = scmp.eq.s32.totalorder %s11, 1
    %p77 = por %p75, %p76
    %p78 = scmp.ne.s32.totalorder %s70, %s73
    %p79 = scmp.eq.s32.totalorder %s11, 0
    %p80 = por %p78, %p79
    %p81 = scmp.ne.s32.totalorder %s70, %s73
    %p82 = scmp.eq.s32.totalorder %s16, 1
    %p83 = por %p81, %p82
    %p84 = scmp.ne.s32.totalorder %s73, %s74
    %p85 = scmp.eq.s32.totalorder %s16, 0
    %p86 = por %p84, %p85
    %p87 = scmp.ne.s32.totalorder %s73, %s74
    %p88 = scmp.eq.s32.totalorder %s17, 1
    %p89 = por %p87, %p88
    %p91 = scmp.ne.s32.totalorder %s74, %s90
    %p92 = scmp.eq.s32.totalorder %s17, 0
    %p93 = por %p91, %p92
    %s94 = ssub.s32 %s18, %s37
    %s95 = ssub.s32 %s20, %s29
    %s96 = sor.u32 %s94, %s95
    %p97 = scmp.eq.s32.totalorder %s96, 0
    %s99 = sadd.s32 %s98, 1
    %s100 = scalar_select %p97, %s98, %s99
    %p103 = pneg %p97
    %p104 = scmp.eq.s32.totalorder %s11, 1
    %p105 = por %p103, %p104
    %p106 = scmp.ne.s32.totalorder %s98, %s101
    %p107 = scmp.eq.s32.totalorder %s11, 0
    %p108 = por %p106, %p107
    %p109 = scmp.ne.s32.totalorder %s98, %s101
    %p110 = scmp.eq.s32.totalorder %s16, 1
    %p111 = por %p109, %p110
    %p112 = scmp.ne.s32.totalorder %s101, %s102
    %p113 = scmp.eq.s32.totalorder %s16, 0
    %p114 = por %p112, %p113
    %p115 = scmp.ne.s32.totalorder %s101, %s102
    %p116 = scmp.eq.s32.totalorder %s17, 1
    %p117 = por %p115, %p116
    %p119 = scmp.ne.s32.totalorder %s102, %s118
    %p120 = scmp.eq.s32.totalorder %s17, 0
    %p121 = por %p119, %p120
    %s123 = sadd.s32 %s122, 1
    %p126 = scmp.eq.s32.totalorder %s11, 1
    %p127 = scmp.ne.s32.totalorder %s122, %s124
    %p128 = scmp.eq.s32.totalorder %s11, 0
    %p129 = por %p127, %p128
    %p130 = scmp.ne.s32.totalorder %s122, %s124
    %p131 = scmp.eq.s32.totalorder %s16, 1
    %p132 = por %p130, %p131
    %p133 = scmp.ne.s32.totalorder %s124, %s125
    %p134 = scmp.eq.s32.totalorder %s16, 0
    %p135 = por %p133, %p134
    %p136 = scmp.ne.s32.totalorder %s124, %s125
    %p137 = scmp.eq.s32.totalorder %s17, 1
    %p138 = por %p136, %p137
    %p140 = scmp.ne.s32.totalorder %s125, %s139
    %p141 = scmp.eq.s32.totalorder %s17, 0
    %p142 = por %p140, %p141
    %s143 = ssub.s32 %s18, %s37
    %s144 = ssub.s32 %s19, %s33
    %s145 = sor.u32 %s143, %s144
    %p146 = scmp.eq.s32.totalorder %s145, 0
    %s148 = sadd.s32 %s147, 1
    %s149 = scalar_select %p146, %s147, %s148
    %p152 = pneg %p146
    %p153 = scmp.eq.s32.totalorder %s11, 1
    %p154 = por %p152, %p153
    %p155 = scmp.ne.s32.totalorder %s147, %s150
    %p156 = scmp.eq.s32.totalorder %s11, 0
    %p157 = por %p155, %p156
    %p158 = scmp.ne.s32.totalorder %s147, %s150
    %p159 = scmp.eq.s32.totalorder %s16, 1
    %p160 = por %p158, %p159
    %p161 = scmp.ne.s32.totalorder %s150, %s151
    %p162 = scmp.eq.s32.totalorder %s16, 0
    %p163 = por %p161, %p162
    %p164 = scmp.ne.s32.totalorder %s150, %s151
    %p165 = scmp.eq.s32.totalorder %s17, 1
    %p166 = por %p164, %p165
    %p168 = scmp.ne.s32.totalorder %s151, %s167
    %p169 = scmp.eq.s32.totalorder %s17, 0
    %p170 = por %p168, %p169
    %s171 = ssub.s32 %s18, %s37
    %s172 = ssub.s32 %s19, %s33
    %s173 = sor.u32 %s171, %s172
    %p174 = scmp.eq.s32.totalorder %s173, 0
    %s176 = sadd.s32 %s175, 1
    %s177 = scalar_select %p174, %s175, %s176
    %p180 = pneg %p174
    %p181 = scmp.eq.s32.totalorder %s11, 1
    %p182 = por %p180, %p181
    %p183 = scmp.ne.s32.totalorder %s175, %s178
    %p184 = scmp.eq.s32.totalorder %s11, 0
    %p185 = por %p183, %p184
    %p186 = scmp.ne.s32.totalorder %s175, %s178
    %p187 = scmp.eq.s32.totalorder %s16, 1
    %p188 = por %p186, %p187
    %p189 = scmp.ne.s32.totalorder %s178, %s179
    %p190 = scmp.eq.s32.totalorder %s16, 0
    %p191 = por %p189, %p190
    %p192 = scmp.ne.s32.totalorder %s178, %s179
    %p193 = scmp.eq.s32.totalorder %s17, 1
    %p194 = por %p192, %p193
    %p196 = scmp.ne.s32.totalorder %s179, %s195
    %p197 = scmp.eq.s32.totalorder %s17, 0
    %p198 = por %p196, %p197
    %p199 = scmp.le.s32.totalorder 1, %s11
    %p200 = scmp.lt.s32.totalorder %s11, 3
    %p201 = pnand %p199, %p200
    %p202 = pneg %p201
    // Predicated region
    $region9: #{input_embed_forward.6} parent=5 // pred_check
      _
    $region10: #{input_embed_forward.6} parent=5 // pred_check_branch
      %204 = sbr.rel (%p201) target = $region12
    $region11: #{input_embed_forward.6} parent=5 // pred_region
      %s205 = ssub.s32 %s11, 1
      // Predicated region
      $region13: #{input_embed_forward.6} parent=11 // pred_check
        %p206 = pneg %p135
      $region14: #{input_embed_forward.6} parent=11 // pred_check_branch
        %208 = sbr.rel (%p206) target = $region16
      $region15: #{input_embed_forward.6} parent=11 // pred_region
        _
      $region16: #{input_embed_forward.6} parent=11 // pred_fallthru
        _
    $region12: #{input_embed_forward.6} parent=5 // pred_fallthru
      _
    %p209 = scmp.lt.s32.totalorder %s11, 2
    // Predicated region
    $region17: #{input_embed_forward.6} parent=5 // pred_check
      %p210 = pneg %p209
    $region18: #{input_embed_forward.6} parent=5 // pred_check_branch
      %212 = sbr.rel (%p210) target = $region20
    $region19: #{input_embed_forward.6} parent=5 // pred_region
      // Predicated region
      $region21: #{input_embed_forward.6} parent=19 // pred_check
        %p213 = pneg %p52
      $region22: #{input_embed_forward.6} parent=19 // pred_check_branch
        %215 = sbr.rel (%p213) target = $region24
      $region23: #{input_embed_forward.6} parent=19 // pred_region
        %p216 = scmp.lt.s32.totalorder %s18, 1
        %s217 = scalar_select %p216, %s18, 1
        %p218 = scmp.lt.s32.totalorder %s19, 0
        %s219 = scalar_select %p218, %s19, 0
        %s220 = sadd.s32 %s219, %s217
        %s221 = smul.addr %s220, 8
        %s222 = scalar_lea.vmem %s0, %s221
      $region24: #{input_embed_forward.6} parent=19 // pred_fallthru
        _
      // Predicated region
      $region25: #{input_embed_forward.6} parent=19 // pred_check
        %p223 = pneg %p80
      $region26: #{input_embed_forward.6} parent=19 // pred_check_branch
        %225 = sbr.rel (%p223) target = $region28
      $region27: #{input_embed_forward.6} parent=19 // pred_region
        %p226 = scmp.lt.s32.totalorder %s18, 1
        %s227 = scalar_select %p226, %s18, 1
        %p228 = scmp.lt.s32.totalorder %s19, 0
        %s229 = scalar_select %p228, %s19, 0
        %s230 = sadd.s32 %s229, %s227
        %s231 = smul.addr %s230, 8
        %s232 = scalar_lea.vmem %s1, %s231
      $region28: #{input_embed_forward.6} parent=19 // pred_fallthru
        _
      // Predicated region
      $region29: #{input_embed_forward.6} parent=19 // pred_check
        %p233 = pneg %p108
      $region30: #{input_embed_forward.6} parent=19 // pred_check_branch
        %235 = sbr.rel (%p233) target = $region32
      $region31: #{input_embed_forward.6} parent=19 // pred_region
        %p236 = scmp.lt.s32.totalorder %s18, 1
        %s237 = scalar_select %p236, %s18, 1
        %p238 = scmp.lt.s32.totalorder %s20, 0
        %s239 = scalar_select %p238, %s20, 0
        %s240 = smul.addr %s237, 4
        %s241 = sadd.s32 %s239, %s240
        %s242 = smul.addr %s241, 4
        %s243 = scalar_lea.vmem %s2, %s242
      $region32: #{input_embed_forward.6} parent=19 // pred_fallthru
        _
      // Predicated region
      $region33: #{input_embed_forward.6} parent=19 // pred_check
        %p244 = pneg %p157
      $region34: #{input_embed_forward.6} parent=19 // pred_check_branch
        %246 = sbr.rel (%p244) target = $region36
      $region35: #{input_embed_forward.6} parent=19 // pred_region
        %p247 = scmp.lt.s32.totalorder %s18, 1
        %s248 = scalar_select %p247, %s18, 1
        %p249 = scmp.lt.s32.totalorder %s19, 0
        %s250 = scalar_select %p249, %s19, 0
        %s251 = sadd.s32 %s250, %s248
        %s252 = smul.addr %s251, 8
        %s253 = scalar_lea.vmem %s4, %s252
      $region36: #{input_embed_forward.6} parent=19 // pred_fallthru
        _
    $region20: #{input_embed_forward.6} parent=5 // pred_fallthru
      _
    %p254 = scmp.le.s32.totalorder 1, %s11
    %p255 = scmp.lt.s32.totalorder %s11, 3
    %p256 = pnand %p254, %p255
    %p257 = pneg %p256
    // Predicated region
    $region37: #{input_embed_forward.6} parent=5 // pred_check
      _
    $region38: #{input_embed_forward.6} parent=5 // pred_check_branch
      %259 = sbr.rel (%p256) target = $region40
    $region39: #{input_embed_forward.6} parent=5 // pred_region
      %s260 = ssub.s32 %s11, 1
      %p261 = scmp.lt.s32.totalorder %s21, 1
      %s262 = scalar_select %p261, %s21, 1
      %p263 = scmp.lt.s32.totalorder %s22, 0
      %s264 = scalar_select %p263, %s22, 0
      %s265 = sadd.s32 %s264, %s262
      %s266 = smul.addr %s265, 8
      %s267 = scalar_lea.vmem %s0, %s266
      %p268 = pneg %p58
      %p269 = pneg %p55
      %p270 = scmp.lt.s32.totalorder %s21, 1
      %s271 = scalar_select %p270, %s21, 1
      %p272 = scmp.lt.s32.totalorder %s22, 0
      %s273 = scalar_select %p272, %s22, 0
      %s274 = sadd.s32 %s273, %s271
      %s275 = smul.addr %s274, 8
      %s276 = scalar_lea.vmem %s1, %s275
      %p277 = pneg %p86
      %p278 = pneg %p83
      %p279 = scmp.lt.s32.totalorder %s21, 1
      %s280 = scalar_select %p279, %s21, 1
      %p281 = scmp.lt.s32.totalorder %s23, 0
      %s282 = scalar_select %p281, %s23, 0
      %s283 = smul.addr %s280, 4
      %s284 = sadd.s32 %s282, %s283
      %s285 = smul.addr %s284, 4
      %s286 = scalar_lea.vmem %s2, %s285
      %p287 = pneg %p114
      %p288 = pneg %p111
      %p289 = pneg %p135
      %p290 = pneg %p132
      %p291 = scmp.lt.s32.totalorder %s21, 1
      %s292 = scalar_select %p291, %s21, 1
      %p293 = scmp.lt.s32.totalorder %s22, 0
      %s294 = scalar_select %p293, %s22, 0
      %s295 = sadd.s32 %s294, %s292
      %s296 = smul.addr %s295, 8
      %s297 = scalar_lea.vmem %s4, %s296
      %p298 = pneg %p163
      %p299 = pneg %p160
      %p300 = pneg %p191
      %p301 = pneg %p188
      %p302 = scmp.lt.s32.totalorder %s21, 1
      %s303 = scalar_select %p302, %s21, 1
      %p304 = scmp.lt.s32.totalorder %s22, 0
      %s305 = scalar_select %p304, %s22, 0
      %s306 = sadd.s32 %s305, %s303
      %s307 = smul.addr %s306, 8
      %s308 = scalar_lea.vmem %s5, %s307
      %p309 = scmp.lt.s32.totalorder %s21, 1
      %s310 = scalar_select %p309, %s21, 1
      %p311 = scmp.lt.s32.totalorder %s22, 0
      %s312 = scalar_select %p311, %s22, 0
      %s313 = sadd.s32 %s312, %s310
      %s314 = smul.addr %s313, 8
      %s315 = scalar_lea.vmem %s0, %s314
      %p316 = scmp.lt.s32.totalorder %s21, 1
      %s317 = scalar_select %p316, %s21, 1
      %p318 = scmp.lt.s32.totalorder %s22, 0
      %s319 = scalar_select %p318, %s22, 0
      %s320 = sadd.s32 %s319, %s317
      %s321 = smul.addr %s320, 8
      %s322 = scalar_lea.vmem %s1, %s321
      %p323 = scmp.lt.s32.totalorder %s21, 1
      %s324 = scalar_select %p323, %s21, 1
      %p325 = scmp.lt.s32.totalorder %s23, 0
      %s326 = scalar_select %p325, %s23, 0
      %s327 = smul.addr %s324, 4
      %s328 = sadd.s32 %s326, %s327
      %s329 = smul.addr %s328, 4
      %s330 = scalar_lea.vmem %s2, %s329
      %p331 = scmp.lt.s32.totalorder %s21, 1
      %s332 = scalar_select %p331, %s21, 1
      %p333 = scmp.lt.s32.totalorder %s22, 0
      %s334 = scalar_select %p333, %s22, 0
      %s335 = sadd.s32 %s334, %s332
      %s336 = smul.addr %s335, 8
      %s337 = scalar_lea.vmem %s4, %s336
      %p338 = scmp.lt.s32.totalorder %s21, 1
      %s339 = scalar_select %p338, %s21, 1
      %p340 = scmp.lt.s32.totalorder %s22, 0
      %s341 = scalar_select %p340, %s22, 0
      %s342 = sadd.s32 %s341, %s339
      %s343 = smul.addr %s342, 8
      %s344 = scalar_lea.vmem %s5, %s343
      %p346 = scmp.eq.s32.totalorder %s23, 0
      // Predicated region
      $region41: #{input_embed_forward.6} parent=39 // pred_check
        %p347 = pneg %p346
      $region42: #{input_embed_forward.6} parent=39 // pred_check_branch
        %349 = sbr.rel (%p347) target = $region44
      $region43: #{input_embed_forward.6} parent=39 // pred_region
        %v350 = vld [vmem:[%s337] sm:$0xff]
        %351 = vst [vmem:[%s344] sm:$0xff] %v350
      $region44: #{input_embed_forward.6} parent=39 // pred_fallthru
        _
      %v352 = vld [vmem:[%s330] sm:$0xf]
      %v353 = vld [vmem:[%s330 + $0x4] sm:$0xf]
      %v354 = vld [vmem:[%s330 + $0x8] sm:$0xf]
      %v355 = vld [vmem:[%s330 + $0xc] sm:$0xf]
      %v356 = vld [vmem:[%s3] sm:$0xf]
      %v357 = vld [vmem:[%s3 + $0x4] sm:$0xf]
      %v358 = vld [vmem:[%s3 + $0x8] sm:$0xf]
      %v359 = vld [vmem:[%s3 + $0xc] sm:$0xf]
      %v364 = vunpack.c.l.b16 %v352
      %v365 = vunpack.c.l.b16 %v353
      %v366 = vunpack.c.l.b16 %v354
      %v367 = vunpack.c.l.b16 %v355
      %v368 = vpack.c.b16 %v365, %v364
      %v369 = vpack.c.b16 %v367, %v366
      %372 = vxpose.xlu0.c.b16.start [1/8] %v368, 128
      %373 = vxpose.xlu0.c.b16.cont [2/8] %v369, 128
      %374 = vxpose.xlu0.c.b16.cont [3/8] 0, 128
      %375 = vxpose.xlu0.c.b16.cont [4/8] 0, 128
      %376 = vxpose.xlu0.c.b16.cont [5/8] 0, 128
      %377 = vxpose.xlu0.c.b16.cont [6/8] 0, 128
      %378 = vxpose.xlu0.c.b16.cont [7/8] 0, 128
      %379 = vxpose.xlu0.c.b16.end [8/8] 0, 128
      %v380 = vpop.trf.xlu0
      %v381 = vpop.trf.xlu0
      %v382 = vpop.trf.xlu0
      %v383 = vpop.trf.xlu0
      %v384 = vpop.trf.xlu0
      %v385 = vpop.trf.xlu0
      %v386 = vpop.trf.xlu0
      %v387 = vpop.trf.xlu0
      %v392 = vunpack.c.l.b16 %v356
      %v393 = vunpack.c.l.b16 %v357
      %v394 = vunpack.c.l.b16 %v358
      %v395 = vunpack.c.l.b16 %v359
      %v396 = vpack.c.b16 %v393, %v392
      %v397 = vpack.c.b16 %v395, %v394
      %vm400 = vcmask 261120
      %v402 = vsel %vm400, %v380, 0
      %v405 = vsel %vm400, %v381, 0
      %v408 = vsel %vm400, %v382, 0
      %v411 = vsel %vm400, %v383, 0
      %v414 = vsel %vm400, %v384, 0
      %v417 = vsel %vm400, %v385, 0
      %v420 = vsel %vm400, %v386, 0
      %v423 = vsel %vm400, %v387, 0
      %425 = vmatpush.bf16.msra.mxu0 0
      %426 = vmatpush.bf16.msra.mxu0 0
      %427 = vmatpush.bf16.msra.mxu0 0
      %428 = vmatpush.bf16.msra.mxu0 0
      %429 = vmatpush.bf16.msra.mxu0 0
      %430 = vmatpush.bf16.msra.mxu0 0
      %431 = vmatpush.bf16.msra.mxu0 %v397
      %432 = vmatpush.bf16.msra.mxu0 %v396
      %433 = vmatmul.bf16.gmra.mxu0 %v402
      %v434 = vpop.f32.mrf.mxu0
      %v435 = vadd.f32 0.0, %v434
      %v436 = vpop.f32.mrf.mxu0
      %v437 = vadd.f32 0.0, %v436
      %438 = vmatmul.bf16.gmra.mxu0 %v405
      %v439 = vpop.f32.mrf.mxu0
      %v440 = vadd.f32 0.0, %v439
      %v441 = vpop.f32.mrf.mxu0
      %v442 = vadd.f32 0.0, %v441
      %443 = vmatmul.bf16.gmra.mxu0 %v408
      %v444 = vpop.f32.mrf.mxu0
      %v445 = vadd.f32 0.0, %v444
      %v446 = vpop.f32.mrf.mxu0
      %v447 = vadd.f32 0.0, %v446
      %448 = vmatmul.bf16.gmra.mxu0 %v411
      %v449 = vpop.f32.mrf.mxu0
      %v450 = vadd.f32 0.0, %v449
      %v451 = vpop.f32.mrf.mxu0
      %v452 = vadd.f32 0.0, %v451
      %453 = vmatmul.bf16.gmra.mxu0 %v414
      %v454 = vpop.f32.mrf.mxu0
      %v455 = vadd.f32 0.0, %v454
      %v456 = vpop.f32.mrf.mxu0
      %v457 = vadd.f32 0.0, %v456
      %458 = vmatmul.bf16.gmra.mxu0 %v417
      %v459 = vpop.f32.mrf.mxu0
      %v460 = vadd.f32 0.0, %v459
      %v461 = vpop.f32.mrf.mxu0
      %v462 = vadd.f32 0.0, %v461
      %463 = vmatmul.bf16.gmra.mxu0 %v420
      %v464 = vpop.f32.mrf.mxu0
      %v465 = vadd.f32 0.0, %v464
      %v466 = vpop.f32.mrf.mxu0
      %v467 = vadd.f32 0.0, %v466
      %468 = vmatmul.bf16.gmra.mxu0 %v423
      %v469 = vpop.f32.mrf.mxu0
      %v470 = vadd.f32 0.0, %v469
      %v471 = vpop.f32.mrf.mxu0
      %v472 = vadd.f32 0.0, %v471
      %473 = vdwg.mxu0
      %v474 = vpack.c.bf16 %v437, %v435
      %v475 = vpack.c.bf16 %v442, %v440
      %v476 = vpack.c.bf16 %v447, %v445
      %v477 = vpack.c.bf16 %v452, %v450
      %v478 = vpack.c.bf16 %v457, %v455
      %v479 = vpack.c.bf16 %v462, %v460
      %v480 = vpack.c.bf16 %v467, %v465
      %v481 = vpack.c.bf16 %v472, %v470
      %s482 = smul.u32 %s23, 128
      %v483 = vlaneseq
      %v484 = vand.u32 %v483, 127
      %v485 = vstv %s482
      %v486 = vadd.s32 %v484, %v485
      %v487 = vld [vmem:[%s315] sm:$0xff]
      %v488 = vld [vmem:[%s322] sm:$0xff]
      %489 = vset.pattern.permute.xlu0 0
      %490 = vperm.xlu0 %489, %v487
      %v491 = vpop.permute.xlu0 %490
      %vm492 = vcmp.eq.s32.totalorder %v486, %v491
      %494 = vset.pattern.permute.xlu0 0
      %495 = vperm.xlu0 %494, %v488
      %v496 = vpop.permute.xlu0 %495
      %v498 = vsel %vm492, %v496, 0.0
      %499 = vset.pattern.permute.xlu0 1
      %500 = vperm.xlu0 %499, %v487
      %v501 = vpop.permute.xlu0 %500
      %vm502 = vcmp.eq.s32.totalorder %v486, %v501
      %503 = vset.pattern.permute.xlu0 1
      %504 = vperm.xlu0 %503, %v488
      %v505 = vpop.permute.xlu0 %504
      %v507 = vsel %vm502, %v505, 0.0
      %v508 = vadd.f32 %v498, %v507
      %509 = vset.pattern.permute.xlu0 2
      %510 = vperm.xlu0 %509, %v487
      %v511 = vpop.permute.xlu0 %510
      %vm512 = vcmp.eq.s32.totalorder %v486, %v511
      %513 = vset.pattern.permute.xlu0 2
      %514 = vperm.xlu0 %513, %v488
      %v515 = vpop.permute.xlu0 %514
      %v517 = vsel %vm512, %v515, 0.0
      %v518 = vadd.f32 %v508, %v517
      %519 = vset.pattern.permute.xlu0 3
      %520 = vperm.xlu0 %519, %v487
      %v521 = vpop.permute.xlu0 %520
      %vm522 = vcmp.eq.s32.totalorder %v486, %v521
      %523 = vset.pattern.permute.xlu0 3
      %524 = vperm.xlu0 %523, %v488
      %v525 = vpop.permute.xlu0 %524
      %v527 = vsel %vm522, %v525, 0.0
      %v528 = vadd.f32 %v518, %v527
      %v529 = vld [vmem:[%s344] sm:$0xff]
      %v530 = vpack.c.bf16 %v528, %v528
      %531 = vmatpush.bf16.msra.mxu0 %v481
      %532 = vmatpush.bf16.msra.mxu0 %v480
      %533 = vmatpush.bf16.msra.mxu0 %v479
      %534 = vmatpush.bf16.msra.mxu0 %v478
      %535 = vmatpush.bf16.msra.mxu0 %v477
      %536 = vmatpush.bf16.msra.mxu0 %v476
      %537 = vmatpush.bf16.msra.mxu0 %v475
      %538 = vmatpush.bf16.msra.mxu0 %v474
      %539 = vmatmul.bf16.gmra.mxu0 %v530
      %v540 = vpop.f32.mrf.mxu0
      %v541 = vadd.f32 0.0, %v540
      %v542 = vpop.f32.mrf.mxu0
      %543 = vdwg.mxu0
      %v544 = vadd.f32 %v529, %v541
      %545 = vst [vmem:[%s344] sm:$0xff] %v544
      %p546 = scmp.lt.s32.totalorder %s21, 1
      %s547 = scalar_select %p546, %s21, 1
      %p548 = scmp.lt.s32.totalorder %s22, 0
      %s549 = scalar_select %p548, %s22, 0
      %s550 = sadd.s32 %s549, %s547
      %s551 = smul.addr %s550, 8
      %s552 = scalar_lea.vmem %s5, %s551
      // Predicated region
      $region45: #{input_embed_forward.6} parent=39 // pred_check
        %p553 = pneg %p188
      $region46: #{input_embed_forward.6} parent=39 // pred_check_branch
        %555 = sbr.rel (%p553) target = $region48
      $region47: #{input_embed_forward.6} parent=39 // pred_region
        _
      $region48: #{input_embed_forward.6} parent=39 // pred_fallthru
        _
    $region40: #{input_embed_forward.6} parent=5 // pred_fallthru
      _
    %p556 = scmp.le.s32.totalorder 2, %s11
    // Predicated region
    $region49: #{input_embed_forward.6} parent=5 // pred_check
      %p557 = pneg %p556
    $region50: #{input_embed_forward.6} parent=5 // pred_check_branch
      %559 = sbr.rel (%p557) target = $region52
    $region51: #{input_embed_forward.6} parent=5 // pred_region
      %s560 = ssub.s32 %s11, 2
      // Predicated region
      $region53: #{input_embed_forward.6} parent=51 // pred_check
        %p561 = pneg %p194
      $region54: #{input_embed_forward.6} parent=51 // pred_check_branch
        %563 = sbr.rel (%p561) target = $region56
      $region55: #{input_embed_forward.6} parent=51 // pred_region
        %p564 = scmp.lt.s32.totalorder %s24, 1
        %s565 = scalar_select %p564, %s24, 1
        %p566 = scmp.lt.s32.totalorder %s25, 0
        %s567 = scalar_select %p566, %s25, 0
        %s568 = sadd.s32 %s567, %s565
        %s569 = smul.addr %s568, 8
        %s570 = scalar_lea.vmem %s5, %s569
      $region56: #{input_embed_forward.6} parent=51 // pred_fallthru
        _
    $region52: #{input_embed_forward.6} parent=5 // pred_fallthru
      _
  $region6: #{input_embed_forward.6} parent=0 // loop_footer
    %s15 = sadd.s32 1, %s11
  $region7: #{input_embed_forward.6} parent=0 // loop_footer_branch
    %10 = sbr.rel target = $region3
  $region8: #{input_embed_forward.6} parent=0 // loop_exit
    _

// kernel: input_embed_forward.5
$region0: #{input_embed_forward.5}
  #allocation0 [shape = 'u32[]', space=smem, size = 0x4, offset = 0x4, fixed_abs, tag = 'smem constant byte address 0x4 - core index']
  #allocation1 [shape = 'u32[72,128]{1,0:T(1,128)}', space=vmem, size = 0x9000, scoped, tag = 'internal scratch']
  %s0 = inlined_call_operand.vmem [shape: s32[2,8,4], index: 0, kind: input, shape index: {}]
  %s1 = inlined_call_operand.vmem [shape: f32[2,8,4], index: 1, kind: input, shape index: {}]
  %s2 = inlined_call_operand.vmem [shape: bf16[2,16,128], index: 2, kind: input, shape index: {}]
  %s3 = inlined_call_operand.vmem [shape: bf16[16,128], index: 3, kind: input, shape index: {}]
  %s4 = inlined_call_operand.vmem [shape: f32[2,8,128], index: 4, kind: input, shape index: {}, may-alias: {4,5}]
  %s5 = inlined_call_operand.vmem [shape: f32[2,8,128], index: 5, kind: output, shape index: {}, may-alias: {4,5}]
  %s6 = sld [smem:[#allocation0]]
  $region57: #{input_embed_forward.5} parent=0
    _
  %s8 = ssub.s32 1, %s6
  %s9 = scalar_select 0, %s8, %s6
  loop: start=0, step=1, limit=4
  $region2: #{input_embed_forward.5} parent=0 // loop_pre_header
    _
  $region3: #{input_embed_forward.5} parent=0 // loop_header
    %s11 = sphi 0, %s15
    %p12 = scmp.ge.s32.totalorder %s11, 4
    %s18 = sphi 0, %s37
    %s19 = sphi 0, %s33
    %s20 = sphi 0, %s29
    %s21 = sphi 0, %s18
    %s22 = sphi 0, %s19
    %s23 = sphi 0, %s20
    %s24 = sphi 0, %s21
    %s25 = sphi 0, %s22
    %s26 = sphi 0, %s23
    %s42 = sphi 0, %s44
    %s45 = sphi 0, %s42
    %s46 = sphi 0, %s45
    %s62 = sphi 0, %s46
    %s70 = sphi 0, %s72
    %s73 = sphi 0, %s70
    %s74 = sphi 0, %s73
    %s90 = sphi 0, %s74
    %s98 = sphi 0, %s100
    %s101 = sphi 0, %s98
    %s102 = sphi 0, %s101
    %s118 = sphi 0, %s102
    %s122 = sphi 0, %s122
    %s124 = sphi 0, %s122
    %s125 = sphi 0, %s124
    %s139 = sphi 0, %s125
    %s147 = sphi 0, %s149
    %s150 = sphi 0, %s147
    %s151 = sphi 0, %s150
    %s167 = sphi 0, %s151
    %s175 = sphi 0, %s177
    %s178 = sphi 0, %s175
    %s179 = sphi 0, %s178
    %s195 = sphi 0, %s179
  $region4: #{input_embed_forward.5} parent=0 // loop_header_branch
    %14 = sbr.rel (%p12) target = $region8
  $region5: #{input_embed_forward.5} parent=0 // loop_body
    %s16 = ssub.s32 %s11, 1
    %s17 = ssub.s32 %s11, 2
    %s27 = sadd.s32 1, %s20
    %p28 = scmp.ge.s32.totalorder %s27, 1
    %s29 = scalar_select %p28, 0, %s27
    %s30 = sadd.s32 1, %s19
    %s31 = scalar_select %p28, %s30, %s19
    %p32 = scmp.ge.s32.totalorder %s31, 1
    %s33 = scalar_select %p32, 0, %s31
    %s34 = sadd.s32 1, %s18
    %s35 = scalar_select %p32, %s34, %s18
    %p36 = scmp.ge.s32.totalorder %s35, 2
    %s37 = scalar_select %p36, 0, %s35
    %s38 = ssub.s32 %s18, %s37
    %s39 = ssub.s32 %s19, %s33
    %s40 = sor.u32 %s38, %s39
    %p41 = scmp.eq.s32.totalorder %s40, 0
    %s43 = sadd.s32 %s42, 1
    %s44 = scalar_select %p41, %s42, %s43
    %p47 = pneg %p41
    %p48 = scmp.eq.s32.totalorder %s11, 1
    %p49 = por %p47, %p48
    %p50 = scmp.ne.s32.totalorder %s42, %s45
    %p51 = scmp.eq.s32.totalorder %s11, 0
    %p52 = por %p50, %p51
    %p53 = scmp.ne.s32.totalorder %s42, %s45
    %p54 = scmp.eq.s32.totalorder %s16, 1
    %p55 = por %p53, %p54
    %p56 = scmp.ne.s32.totalorder %s45, %s46
    %p57 = scmp.eq.s32.totalorder %s16, 0
    %p58 = por %p56, %p57
    %p59 = scmp.ne.s32.totalorder %s45, %s46
    %p60 = scmp.eq.s32.totalorder %s17, 1
    %p61 = por %p59, %p60
    %p63 = scmp.ne.s32.totalorder %s46, %s62
    %p64 = scmp.eq.s32.totalorder %s17, 0
    %p65 = por %p63, %p64
    %s66 = ssub.s32 %s18, %s37
    %s67 = ssub.s32 %s19, %s33
    %s68 = sor.u32 %s66, %s67
    %p69 = scmp.eq.s32.totalorder %s68, 0
    %s71 = sadd.s32 %s70, 1
    %s72 = scalar_select %p69, %s70, %s71
    %p75 = pneg %p69
    %p76 = scmp.eq.s32.totalorder %s11, 1
    %p77 = por %p75, %p76
    %p78 = scmp.ne.s32.totalorder %s70, %s73
    %p79 = scmp.eq.s32.totalorder %s11, 0
    %p80 = por %p78, %p79
    %p81 = scmp.ne.s32.totalorder %s70, %s73
    %p82 = scmp.eq.s32.totalorder %s16, 1
    %p83 = por %p81, %p82
    %p84 = scmp.ne.s32.totalorder %s73, %s74
    %p85 = scmp.eq.s32.totalorder %s16, 0
    %p86 = por %p84, %p85
    %p87 = scmp.ne.s32.totalorder %s73, %s74
    %p88 = scmp.eq.s32.totalorder %s17, 1
    %p89 = por %p87, %p88
    %p91 = scmp.ne.s32.totalorder %s74, %s90
    %p92 = scmp.eq.s32.totalorder %s17, 0
    %p93 = por %p91, %p92
    %s94 = ssub.s32 %s18, %s37
    %s95 = ssub.s32 %s20, %s29
    %s96 = sor.u32 %s94, %s95
    %p97 = scmp.eq.s32.totalorder %s96, 0
    %s99 = sadd.s32 %s98, 1
    %s100 = scalar_select %p97, %s98, %s99
    %p103 = pneg %p97
    %p104 = scmp.eq.s32.totalorder %s11, 1
    %p105 = por %p103, %p104
    %p106 = scmp.ne.s32.totalorder %s98, %s101
    %p107 = scmp.eq.s32.totalorder %s11, 0
    %p108 = por %p106, %p107
    %p109 = scmp.ne.s32.totalorder %s98, %s101
    %p110 = scmp.eq.s32.totalorder %s16, 1
    %p111 = por %p109, %p110
    %p112 = scmp.ne.s32.totalorder %s101, %s102
    %p113 = scmp.eq.s32.totalorder %s16, 0
    %p114 = por %p112, %p113
    %p115 = scmp.ne.s32.totalorder %s101, %s102
    %p116 = scmp.eq.s32.totalorder %s17, 1
    %p117 = por %p115, %p116
    %p119 = scmp.ne.s32.totalorder %s102, %s118
    %p120 = scmp.eq.s32.totalorder %s17, 0
    %p121 = por %p119, %p120
    %s123 = sadd.s32 %s122, 1
    %p126 = scmp.eq.s32.totalorder %s11, 1
    %p127 = scmp.ne.s32.totalorder %s122, %s124
    %p128 = scmp.eq.s32.totalorder %s11, 0
    %p129 = por %p127, %p128
    %p130 = scmp.ne.s32.totalorder %s122, %s124
    %p131 = scmp.eq.s32.totalorder %s16, 1
    %p132 = por %p130, %p131
    %p133 = scmp.ne.s32.totalorder %s124, %s125
    %p134 = scmp.eq.s32.totalorder %s16, 0
    %p135 = por %p133, %p134
    %p136 = scmp.ne.s32.totalorder %s124, %s125
    %p137 = scmp.eq.s32.totalorder %s17, 1
    %p138 = por %p136, %p137
    %p140 = scmp.ne.s32.totalorder %s125, %s139
    %p141 = scmp.eq.s32.totalorder %s17, 0
    %p142 = por %p140, %p141
    %s143 = ssub.s32 %s18, %s37
    %s144 = ssub.s32 %s19, %s33
    %s145 = sor.u32 %s143, %s144
    %p146 = scmp.eq.s32.totalorder %s145, 0
    %s148 = sadd.s32 %s147, 1
    %s149 = scalar_select %p146, %s147, %s148
    %p152 = pneg %p146
    %p153 = scmp.eq.s32.totalorder %s11, 1
    %p154 = por %p152, %p153
    %p155 = scmp.ne.s32.totalorder %s147, %s150
    %p156 = scmp.eq.s32.totalorder %s11, 0
    %p157 = por %p155, %p156
    %p158 = scmp.ne.s32.totalorder %s147, %s150
    %p159 = scmp.eq.s32.totalorder %s16, 1
    %p160 = por %p158, %p159
    %p161 = scmp.ne.s32.totalorder %s150, %s151
    %p162 = scmp.eq.s32.totalorder %s16, 0
    %p163 = por %p161, %p162
    %p164 = scmp.ne.s32.totalorder %s150, %s151
    %p165 = scmp.eq.s32.totalorder %s17, 1
    %p166 = por %p164, %p165
    %p168 = scmp.ne.s32.totalorder %s151, %s167
    %p169 = scmp.eq.s32.totalorder %s17, 0
    %p170 = por %p168, %p169
    %s171 = ssub.s32 %s18, %s37
    %s172 = ssub.s32 %s19, %s33
    %s173 = sor.u32 %s171, %s172
    %p174 = scmp.eq.s32.totalorder %s173, 0
    %s176 = sadd.s32 %s175, 1
    %s177 = scalar_select %p174, %s175, %s176
    %p180 = pneg %p174
    %p181 = scmp.eq.s32.totalorder %s11, 1
    %p182 = por %p180, %p181
    %p183 = scmp.ne.s32.totalorder %s175, %s178
    %p184 = scmp.eq.s32.totalorder %s11, 0
    %p185 = por %p183, %p184
    %p186 = scmp.ne.s32.totalorder %s175, %s178
    %p187 = scmp.eq.s32.totalorder %s16, 1
    %p188 = por %p186, %p187
    %p189 = scmp.ne.s32.totalorder %s178, %s179
    %p190 = scmp.eq.s32.totalorder %s16, 0
    %p191 = por %p189, %p190
    %p192 = scmp.ne.s32.totalorder %s178, %s179
    %p193 = scmp.eq.s32.totalorder %s17, 1
    %p194 = por %p192, %p193
    %p196 = scmp.ne.s32.totalorder %s179, %s195
    %p197 = scmp.eq.s32.totalorder %s17, 0
    %p198 = por %p196, %p197
    %p199 = scmp.le.s32.totalorder 1, %s11
    %p200 = scmp.lt.s32.totalorder %s11, 3
    %p201 = pnand %p199, %p200
    %p202 = pneg %p201
    // Predicated region
    $region9: #{input_embed_forward.5} parent=5 // pred_check
      _
    $region10: #{input_embed_forward.5} parent=5 // pred_check_branch
      %204 = sbr.rel (%p201) target = $region12
    $region11: #{input_embed_forward.5} parent=5 // pred_region
      %s205 = ssub.s32 %s11, 1
      // Predicated region
      $region13: #{input_embed_forward.5} parent=11 // pred_check
        %p206 = pneg %p135
      $region14: #{input_embed_forward.5} parent=11 // pred_check_branch
        %208 = sbr.rel (%p206) target = $region16
      $region15: #{input_embed_forward.5} parent=11 // pred_region
        _
      $region16: #{input_embed_forward.5} parent=11 // pred_fallthru
        _
    $region12: #{input_embed_forward.5} parent=5 // pred_fallthru
      _
    %p209 = scmp.lt.s32.totalorder %s11, 2
    // Predicated region
    $region17: #{input_embed_forward.5} parent=5 // pred_check
      %p210 = pneg %p209
    $region18: #{input_embed_forward.5} parent=5 // pred_check_branch
      %212 = sbr.rel (%p210) target = $region20
    $region19: #{input_embed_forward.5} parent=5 // pred_region
      // Predicated region
      $region21: #{input_embed_forward.5} parent=19 // pred_check
        %p213 = pneg %p52
      $region22: #{input_embed_forward.5} parent=19 // pred_check_branch
        %215 = sbr.rel (%p213) target = $region24
      $region23: #{input_embed_forward.5} parent=19 // pred_region
        %p216 = scmp.lt.s32.totalorder %s18, 1
        %s217 = scalar_select %p216, %s18, 1
        %p218 = scmp.lt.s32.totalorder %s19, 0
        %s219 = scalar_select %p218, %s19, 0
        %s220 = sadd.s32 %s219, %s217
        %s221 = smul.addr %s220, 8
        %s222 = scalar_lea.vmem %s0, %s221
      $region24: #{input_embed_forward.5} parent=19 // pred_fallthru
        _
      // Predicated region
      $region25: #{input_embed_forward.5} parent=19 // pred_check
        %p223 = pneg %p80
      $region26: #{input_embed_forward.5} parent=19 // pred_check_branch
        %225 = sbr.rel (%p223) target = $region28
      $region27: #{input_embed_forward.5} parent=19 // pred_region
        %p226 = scmp.lt.s32.totalorder %s18, 1
        %s227 = scalar_select %p226, %s18, 1
        %p228 = scmp.lt.s32.totalorder %s19, 0
        %s229 = scalar_select %p228, %s19, 0
        %s230 = sadd.s32 %s229, %s227
        %s231 = smul.addr %s230, 8
        %s232 = scalar_lea.vmem %s1, %s231
      $region28: #{input_embed_forward.5} parent=19 // pred_fallthru
        _
      // Predicated region
      $region29: #{input_embed_forward.5} parent=19 // pred_check
        %p233 = pneg %p108
      $region30: #{input_embed_forward.5} parent=19 // pred_check_branch
        %235 = sbr.rel (%p233) target = $region32
      $region31: #{input_embed_forward.5} parent=19 // pred_region
        %p236 = scmp.lt.s32.totalorder %s18, 1
        %s237 = scalar_select %p236, %s18, 1
        %p238 = scmp.lt.s32.totalorder %s20, 0
        %s239 = scalar_select %p238, %s20, 0
        %s240 = smul.addr %s237, 2
        %s241 = sadd.s32 %s239, %s240
        %s242 = smul.addr %s241, 4
        %s243 = scalar_lea.vmem %s2, %s242
      $region32: #{input_embed_forward.5} parent=19 // pred_fallthru
        _
      // Predicated region
      $region33: #{input_embed_forward.5} parent=19 // pred_check
        %p244 = pneg %p157
      $region34: #{input_embed_forward.5} parent=19 // pred_check_branch
        %246 = sbr.rel (%p244) target = $region36
      $region35: #{input_embed_forward.5} parent=19 // pred_region
        %p247 = scmp.lt.s32.totalorder %s18, 1
        %s248 = scalar_select %p247, %s18, 1
        %p249 = scmp.lt.s32.totalorder %s19, 0
        %s250 = scalar_select %p249, %s19, 0
        %s251 = sadd.s32 %s250, %s248
        %s252 = smul.addr %s251, 8
        %s253 = scalar_lea.vmem %s4, %s252
      $region36: #{input_embed_forward.5} parent=19 // pred_fallthru
        _
    $region20: #{input_embed_forward.5} parent=5 // pred_fallthru
      _
    %p254 = scmp.le.s32.totalorder 1, %s11
    %p255 = scmp.lt.s32.totalorder %s11, 3
    %p256 = pnand %p254, %p255
    %p257 = pneg %p256
    // Predicated region
    $region37: #{input_embed_forward.5} parent=5 // pred_check
      _
    $region38: #{input_embed_forward.5} parent=5 // pred_check_branch
      %259 = sbr.rel (%p256) target = $region40
    $region39: #{input_embed_forward.5} parent=5 // pred_region
      %s260 = ssub.s32 %s11, 1
      %p261 = scmp.lt.s32.totalorder %s21, 1
      %s262 = scalar_select %p261, %s21, 1
      %p263 = scmp.lt.s32.totalorder %s22, 0
      %s264 = scalar_select %p263, %s22, 0
      %s265 = sadd.s32 %s264, %s262
      %s266 = smul.addr %s265, 8
      %s267 = scalar_lea.vmem %s0, %s266
      %p268 = pneg %p58
      %p269 = pneg %p55
      %p270 = scmp.lt.s32.totalorder %s21, 1
      %s271 = scalar_select %p270, %s21, 1
      %p272 = scmp.lt.s32.totalorder %s22, 0
      %s273 = scalar_select %p272, %s22, 0
      %s274 = sadd.s32 %s273, %s271
      %s275 = smul.addr %s274, 8
      %s276 = scalar_lea.vmem %s1, %s275
      %p277 = pneg %p86
      %p278 = pneg %p83
      %p279 = scmp.lt.s32.totalorder %s21, 1
      %s280 = scalar_select %p279, %s21, 1
      %p281 = scmp.lt.s32.totalorder %s23, 0
      %s282 = scalar_select %p281, %s23, 0
      %s283 = smul.addr %s280, 2
      %s284 = sadd.s32 %s282, %s283
      %s285 = smul.addr %s284, 4
      %s286 = scalar_lea.vmem %s2, %s285
      %p287 = pneg %p114
      %p288 = pneg %p111
      %p289 = pneg %p135
      %p290 = pneg %p132
      %p291 = scmp.lt.s32.totalorder %s21, 1
      %s292 = scalar_select %p291, %s21, 1
      %p293 = scmp.lt.s32.totalorder %s22, 0
      %s294 = scalar_select %p293, %s22, 0
      %s295 = sadd.s32 %s294, %s292
      %s296 = smul.addr %s295, 8
      %s297 = scalar_lea.vmem %s4, %s296
      %p298 = pneg %p163
      %p299 = pneg %p160
      %p300 = pneg %p191
      %p301 = pneg %p188
      %p302 = scmp.lt.s32.totalorder %s21, 1
      %s303 = scalar_select %p302, %s21, 1
      %p304 = scmp.lt.s32.totalorder %s22, 0
      %s305 = scalar_select %p304, %s22, 0
      %s306 = sadd.s32 %s305, %s303
      %s307 = smul.addr %s306, 8
      %s308 = scalar_lea.vmem %s5, %s307
      %p309 = scmp.lt.s32.totalorder %s21, 1
      %s310 = scalar_select %p309, %s21, 1
      %p311 = scmp.lt.s32.totalorder %s22, 0
      %s312 = scalar_select %p311, %s22, 0
      %s313 = sadd.s32 %s312, %s310
      %s314 = smul.addr %s313, 8
      %s315 = scalar_lea.vmem %s0, %s314
      %p316 = scmp.lt.s32.totalorder %s21, 1
      %s317 = scalar_select %p316, %s21, 1
      %p318 = scmp.lt.s32.totalorder %s22, 0
      %s319 = scalar_select %p318, %s22, 0
      %s320 = sadd.s32 %s319, %s317
      %s321 = smul.addr %s320, 8
      %s322 = scalar_lea.vmem %s1, %s321
      %p323 = scmp.lt.s32.totalorder %s21, 1
      %s324 = scalar_select %p323, %s21, 1
      %p325 = scmp.lt.s32.totalorder %s23, 0
      %s326 = scalar_select %p325, %s23, 0
      %s327 = smul.addr %s324, 2
      %s328 = sadd.s32 %s326, %s327
      %s329 = smul.addr %s328, 4
      %s330 = scalar_lea.vmem %s2, %s329
      %p331 = scmp.lt.s32.totalorder %s21, 1
      %s332 = scalar_select %p331, %s21, 1
      %p333 = scmp.lt.s32.totalorder %s22, 0
      %s334 = scalar_select %p333, %s22, 0
      %s335 = sadd.s32 %s334, %s332
      %s336 = smul.addr %s335, 8
      %s337 = scalar_lea.vmem %s4, %s336
      %p338 = scmp.lt.s32.totalorder %s21, 1
      %s339 = scalar_select %p338, %s21, 1
      %p340 = scmp.lt.s32.totalorder %s22, 0
      %s341 = scalar_select %p340, %s22, 0
      %s342 = sadd.s32 %s341, %s339
      %s343 = smul.addr %s342, 8
      %s344 = scalar_lea.vmem %s5, %s343
      %p346 = scmp.eq.s32.totalorder %s23, 0
      // Predicated region
      $region41: #{input_embed_forward.5} parent=39 // pred_check
        %p347 = pneg %p346
      $region42: #{input_embed_forward.5} parent=39 // pred_check_branch
        %349 = sbr.rel (%p347) target = $region44
      $region43: #{input_embed_forward.5} parent=39 // pred_region
        %v350 = vld [vmem:[%s337] sm:$0xff]
        %351 = vst [vmem:[%s344] sm:$0xff] %v350
      $region44: #{input_embed_forward.5} parent=39 // pred_fallthru
        _
      %v352 = vld [vmem:[%s330] sm:$0xf]
      %v353 = vld [vmem:[%s330 + $0x4] sm:$0xf]
      %v354 = vld [vmem:[%s3] sm:$0xf]
      %v355 = vld [vmem:[%s3 + $0x4] sm:$0xf]
      %v358 = vunpack.c.l.b16 %v352
      %v359 = vunpack.c.l.b16 %v353
      %v360 = vpack.c.b16 %v359, %v358
      %362 = vxpose.xlu0.c.b16.start [1/8] %v360, 128
      %363 = vxpose.xlu0.c.b16.cont [2/8] 0, 128
      %364 = vxpose.xlu0.c.b16.cont [3/8] 0, 128
      %365 = vxpose.xlu0.c.b16.cont [4/8] 0, 128
      %366 = vxpose.xlu0.c.b16.cont [5/8] 0, 128
      %367 = vxpose.xlu0.c.b16.cont [6/8] 0, 128
      %368 = vxpose.xlu0.c.b16.cont [7/8] 0, 128
      %369 = vxpose.xlu0.c.b16.end [8/8] 0, 128
      %v370 = vpop.trf.xlu0
      %v371 = vpop.trf.xlu0
      %v372 = vpop.trf.xlu0
      %v373 = vpop.trf.xlu0
      %v374 = vpop.trf.xlu0
      %v375 = vpop.trf.xlu0
      %v376 = vpop.trf.xlu0
      %v377 = vpop.trf.xlu0
      %v380 = vunpack.c.l.b16 %v354
      %v381 = vunpack.c.l.b16 %v355
      %v382 = vpack.c.b16 %v381, %v380
      %vm384 = vcmask 130048
      %v386 = vsel %vm384, %v370, 0
      %v389 = vsel %vm384, %v371, 0
      %v392 = vsel %vm384, %v372, 0
      %v395 = vsel %vm384, %v373, 0
      %v398 = vsel %vm384, %v374, 0
      %v401 = vsel %vm384, %v375, 0
      %v404 = vsel %vm384, %v376, 0
      %v407 = vsel %vm384, %v377, 0
      %409 = vmatpush.bf16.msra.mxu0 0
      %410 = vmatpush.bf16.msra.mxu0 0
      %411 = vmatpush.bf16.msra.mxu0 0
      %412 = vmatpush.bf16.msra.mxu0 0
      %413 = vmatpush.bf16.msra.mxu0 0
      %414 = vmatpush.bf16.msra.mxu0 0
      %415 = vmatpush.bf16.msra.mxu0 0
      %416 = vmatpush.bf16.msra.mxu0 %v382
      %417 = vmatmul.bf16.gmra.mxu0 %v386
      %v418 = vpop.f32.mrf.mxu0
      %v419 = vadd.f32 0.0, %v418
      %v420 = vpop.f32.mrf.mxu0
      %v421 = vadd.f32 0.0, %v420
      %422 = vmatmul.bf16.gmra.mxu0 %v389
      %v423 = vpop.f32.mrf.mxu0
      %v424 = vadd.f32 0.0, %v423
      %v425 = vpop.f32.mrf.mxu0
      %v426 = vadd.f32 0.0, %v425
      %427 = vmatmul.bf16.gmra.mxu0 %v392
      %v428 = vpop.f32.mrf.mxu0
      %v429 = vadd.f32 0.0, %v428
      %v430 = vpop.f32.mrf.mxu0
      %v431 = vadd.f32 0.0, %v430
      %432 = vmatmul.bf16.gmra.mxu0 %v395
      %v433 = vpop.f32.mrf.mxu0
      %v434 = vadd.f32 0.0, %v433
      %v435 = vpop.f32.mrf.mxu0
      %v436 = vadd.f32 0.0, %v435
      %437 = vmatmul.bf16.gmra.mxu0 %v398
      %v438 = vpop.f32.mrf.mxu0
      %v439 = vadd.f32 0.0, %v438
      %v440 = vpop.f32.mrf.mxu0
      %v441 = vadd.f32 0.0, %v440
      %442 = vmatmul.bf16.gmra.mxu0 %v401
      %v443 = vpop.f32.mrf.mxu0
      %v444 = vadd.f32 0.0, %v443
      %v445 = vpop.f32.mrf.mxu0
      %v446 = vadd.f32 0.0, %v445
      %447 = vmatmul.bf16.gmra.mxu0 %v404
      %v448 = vpop.f32.mrf.mxu0
      %v449 = vadd.f32 0.0, %v448
      %v450 = vpop.f32.mrf.mxu0
      %v451 = vadd.f32 0.0, %v450
      %452 = vmatmul.bf16.gmra.mxu0 %v407
      %v453 = vpop.f32.mrf.mxu0
      %v454 = vadd.f32 0.0, %v453
      %v455 = vpop.f32.mrf.mxu0
      %v456 = vadd.f32 0.0, %v455
      %457 = vdwg.mxu0
      %v458 = vpack.c.bf16 %v421, %v419
      %v459 = vpack.c.bf16 %v426, %v424
      %v460 = vpack.c.bf16 %v431, %v429
      %v461 = vpack.c.bf16 %v436, %v434
      %v462 = vpack.c.bf16 %v441, %v439
      %v463 = vpack.c.bf16 %v446, %v444
      %v464 = vpack.c.bf16 %v451, %v449
      %v465 = vpack.c.bf16 %v456, %v454
      %s466 = smul.u32 %s23, 128
      %v467 = vlaneseq
      %v468 = vand.u32 %v467, 127
      %v469 = vstv %s466
      %v470 = vadd.s32 %v468, %v469
      %v471 = vld [vmem:[%s315] sm:$0xff]
      %v472 = vld [vmem:[%s322] sm:$0xff]
      %473 = vset.pattern.permute.xlu0 0
      %474 = vperm.xlu0 %473, %v471
      %v475 = vpop.permute.xlu0 %474
      %vm476 = vcmp.eq.s32.totalorder %v470, %v475
      %478 = vset.pattern.permute.xlu0 0
      %479 = vperm.xlu0 %478, %v472
      %v480 = vpop.permute.xlu0 %479
      %v482 = vsel %vm476, %v480, 0.0
      %483 = vset.pattern.permute.xlu0 1
      %484 = vperm.xlu0 %483, %v471
      %v485 = vpop.permute.xlu0 %484
      %vm486 = vcmp.eq.s32.totalorder %v470, %v485
      %487 = vset.pattern.permute.xlu0 1
      %488 = vperm.xlu0 %487, %v472
      %v489 = vpop.permute.xlu0 %488
      %v491 = vsel %vm486, %v489, 0.0
      %v492 = vadd.f32 %v482, %v491
      %493 = vset.pattern.permute.xlu0 2
      %494 = vperm.xlu0 %493, %v471
      %v495 = vpop.permute.xlu0 %494
      %vm496 = vcmp.eq.s32.totalorder %v470, %v495
      %497 = vset.pattern.permute.xlu0 2
      %498 = vperm.xlu0 %497, %v472
      %v499 = vpop.permute.xlu0 %498
      %v501 = vsel %vm496, %v499, 0.0
      %v502 = vadd.f32 %v492, %v501
      %503 = vset.pattern.permute.xlu0 3
      %504 = vperm.xlu0 %503, %v471
      %v505 = vpop.permute.xlu0 %504
      %vm506 = vcmp.eq.s32.totalorder %v470, %v505
      %507 = vset.pattern.permute.xlu0 3
      %508 = vperm.xlu0 %507, %v472
      %v509 = vpop.permute.xlu0 %508
      %v511 = vsel %vm506, %v509, 0.0
      %v512 = vadd.f32 %v502, %v511
      %v513 = vld [vmem:[%s344] sm:$0xff]
      %v514 = vpack.c.bf16 %v512, %v512
      %515 = vmatpush.bf16.msra.mxu0 %v465
      %516 = vmatpush.bf16.msra.mxu0 %v464
      %517 = vmatpush.bf16.msra.mxu0 %v463
      %518 = vmatpush.bf16.msra.mxu0 %v462
      %519 = vmatpush.bf16.msra.mxu0 %v461
      %520 = vmatpush.bf16.msra.mxu0 %v460
      %521 = vmatpush.bf16.msra.mxu0 %v459
      %522 = vmatpush.bf16.msra.mxu0 %v458
      %523 = vmatmul.bf16.gmra.mxu0 %v514
      %v524 = vpop.f32.mrf.mxu0
      %v525 = vadd.f32 0.0, %v524
      %v526 = vpop.f32.mrf.mxu0
      %527 = vdwg.mxu0
      %v528 = vadd.f32 %v513, %v525
      %529 = vst [vmem:[%s344] sm:$0xff] %v528
      %p530 = scmp.lt.s32.totalorder %s21, 1
      %s531 = scalar_select %p530, %s21, 1
      %p532 = scmp.lt.s32.totalorder %s22, 0
      %s533 = scalar_select %p532, %s22, 0
      %s534 = sadd.s32 %s533, %s531
      %s535 = smul.addr %s534, 8
      %s536 = scalar_lea.vmem %s5, %s535
      // Predicated region
      $region45: #{input_embed_forward.5} parent=39 // pred_check
        %p537 = pneg %p188
      $region46: #{input_embed_forward.5} parent=39 // pred_check_branch
        %539 = sbr.rel (%p537) target = $region48
      $region47: #{input_embed_forward.5} parent=39 // pred_region
        _
      $region48: #{input_embed_forward.5} parent=39 // pred_fallthru
        _
    $region40: #{input_embed_forward.5} parent=5 // pred_fallthru
      _
    %p540 = scmp.le.s32.totalorder 2, %s11
    // Predicated region
    $region49: #{input_embed_forward.5} parent=5 // pred_check
      %p541 = pneg %p540
    $region50: #{input_embed_forward.5} parent=5 // pred_check_branch
      %543 = sbr.rel (%p541) target = $region52
    $region51: #{input_embed_forward.5} parent=5 // pred_region
      %s544 = ssub.s32 %s11, 2
      // Predicated region
      $region53: #{input_embed_forward.5} parent=51 // pred_check
        %p545 = pneg %p194
      $region54: #{input_embed_forward.5} parent=51 // pred_check_branch
        %547 = sbr.rel (%p545) target = $region56
      $region55: #{input_embed_forward.5} parent=51 // pred_region
        %p548 = scmp.lt.s32.totalorder %s24, 1
        %s549 = scalar_select %p548, %s24, 1
        %p550 = scmp.lt.s32.totalorder %s25, 0
        %s551 = scalar_select %p550, %s25, 0
        %s552 = sadd.s32 %s551, %s549
        %s553 = smul.addr %s552, 8
        %s554 = scalar_lea.vmem %s5, %s553
      $region56: #{input_embed_forward.5} parent=51 // pred_fallthru
        _
    $region52: #{input_embed_forward.5} parent=5 // pred_fallthru
      _
  $region6: #{input_embed_forward.5} parent=0 // loop_footer
    %s15 = sadd.s32 1, %s11
  $region7: #{input_embed_forward.5} parent=0 // loop_footer_branch
    %10 = sbr.rel target = $region3
  $region8: #{input_embed_forward.5} parent=0 // loop_exit
    _

</llo_original>
